<compile_context>
chip_gen: v6e
topology: v6e:2x2x1
jax: 0.10.0
libtpu: 0.0.40
codegen_flags: <defaults>
</compile_context>

<pallas_src>
import jax
import jax.numpy as jnp
from jax.experimental import pallas as pl
from jax.experimental.pallas import tpu as pltpu

LANE = 128      # TPU lane width; fc2/softmax are computed lane-dense in this space
OUT_PAD = 8     # lanes actually written back to HBM (>= action_dim)


def policy_net_kernel(x_ref, w1_ref, b1_ref, w2p_ref, b2p_ref, o_ref):
    # ---- fc1 + ReLU on the VPU (K = state_dim = 4 is far too small for the MXU) ----
    x = x_ref[...]                                    # (TM, S) f32
    w1 = w1_ref[...]                                  # (S, H)  f32
    state_dim = x_ref.shape[1]
    h = b1_ref[...] + x[:, 0:1] * w1[0:1, :]          # (TM, H)
    for k in range(1, state_dim):                     # static unroll, S == 4
        h = h + x[:, k:k + 1] * w1[k:k + 1, :]
    h = jnp.maximum(h, 0.0)

    # ---- fc2: bf16 MXU matmul with f32 accumulation, lane-dense (N padded to 128) ----
    logits = jnp.dot(h.astype(jnp.bfloat16), w2p_ref[...],
                     preferred_element_type=jnp.float32)
    logits = logits + b2p_ref[...]                    # (TM, 128); padded lanes ~ -1e30

    # ---- softmax over the (padded) action axis; padded lanes exp() to exactly 0 ----
    m = jnp.max(logits, axis=-1, keepdims=True)
    e = jnp.exp(logits - m)
    denom = jnp.sum(e, axis=-1, keepdims=True)
    # Exact divide: only OUT_PAD lanes are written back, so the cost is negligible
    # and rows stay exactly normalized for downstream log-prob / sampling use.
    o_ref[...] = (e[:, :OUT_PAD] / denom).astype(o_ref.dtype)


def policy_net_forward(x, w1, b1, w2, b2, *, block_m=512):
    """Fused fc1 -> ReLU -> fc2 -> softmax.

    x:  [batch, state_dim]    w1: [state_dim, hidden]   b1: [1, hidden]
    w2: [hidden, action_dim]  b2: [1, action_dim]
    Returns [batch, action_dim] action probabilities (f32).
    """
    batch, state_dim = x.shape
    hidden_dim = w1.shape[1]
    action_dim = w2.shape[1]
    assert action_dim <= OUT_PAD <= LANE
    assert block_m % 8 == 0

    # Lane-dense fc2: zero-pad weight columns to 128; pad bias with -1e30 so the
    # padded lanes get exactly 0 probability.  Weights pre-cast to bf16 (MXU
    # native); bias stays f32 (added to the f32 MXU accumulator).
    pad = LANE - action_dim
    w2_p = jnp.pad(w2, ((0, 0), (0, pad))).astype(jnp.bfloat16)
    b2_p = jnp.pad(b2, ((0, 0), (0, pad)), constant_values=-1e30).astype(jnp.float32)

    # Batch tiling: big tiles amortize per-grid-step overhead; for tiny batches
    # shrink the tile so we don't burn compute on padding rows.
    tile_m = int(max(8, min(block_m, pl.cdiv(batch, 8) * 8)))
    padded_batch = pl.cdiv(batch, tile_m) * tile_m
    if padded_batch != batch:
        x = jnp.pad(x, ((0, padded_batch - batch), (0, 0)))

    grid = (padded_batch // tile_m,)
    vmem = pltpu.MemorySpace.VMEM

    out = pl.pallas_call(
        policy_net_kernel,
        out_shape=jax.ShapeDtypeStruct((padded_batch, OUT_PAD), jnp.float32),
        grid_spec=pltpu.PrefetchScalarGridSpec(
            num_scalar_prefetch=0,
            grid=grid,
            in_specs=[
                # x: streamed batch tiles (auto-pipelined HBM->VMEM DMA).
                pl.BlockSpec((tile_m, state_dim), lambda i: (i, 0),
                             memory_space=vmem),
                # Weights/biases: constant block index -> VMEM-resident across
                # all grid steps (no re-DMA per tile).
                pl.BlockSpec((state_dim, hidden_dim), lambda i: (0, 0),
                             memory_space=vmem),
                pl.BlockSpec((1, hidden_dim), lambda i: (0, 0),
                             memory_space=vmem),
                pl.BlockSpec((hidden_dim, LANE), lambda i: (0, 0),
                             memory_space=vmem),
                pl.BlockSpec((1, LANE), lambda i: (0, 0),
                             memory_space=vmem),
            ],
            # Narrow (8-lane) output: 16x less writeback than the padded 128-lane
            # buffer; the 128-lane softmax never leaves VMEM.
            out_specs=pl.BlockSpec((tile_m, OUT_PAD), lambda i: (i, 0),
                                   memory_space=vmem),
        ),
        compiler_params=pltpu.CompilerParams(
            # Batch axis is embarrassingly parallel: shards over v7x's 2 TCs,
            # harmless on v5e/v6e.
            dimension_semantics=("parallel",),
        ),
    )(x, w1, b1, w2_p, b2_p)

    # Drop batch-padding rows and OUT_PAD -> action_dim lanes (cheap: the buffer
    # being sliced is only 8 lanes wide now).
    return out[:batch, :action_dim]


def init_params(key, state_dim, hidden_dim, action_dim):
    """Deterministic init mimicking nn.Linear's U(-1/sqrt(fan_in), 1/sqrt(fan_in))."""
    k1, k2, k3, k4 = jax.random.split(key, 4)
    bound1 = 1.0 / jnp.sqrt(state_dim)
    bound2 = 1.0 / jnp.sqrt(hidden_dim)
    # Stored as [in, out] (transpose of PyTorch's [out, in]) so the kernel does x @ W + b.
    w1 = jax.random.uniform(k1, (state_dim, hidden_dim), jnp.float32, -bound1, bound1)
    b1 = jax.random.uniform(k2, (1, hidden_dim), jnp.float32, -bound1, bound1)
    w2 = jax.random.uniform(k3, (hidden_dim, action_dim), jnp.float32, -bound2, bound2)
    b2 = jax.random.uniform(k4, (1, action_dim), jnp.float32, -bound2, bound2)
    return w1, b1, w2, b2


if __name__ == "__main__":
    # CartPole-v1 PolicyNet: state_dim=4, hidden_dim=128, action_dim=2.
    state_dim, hidden_dim, action_dim = 4, 128, 2
    batch = 1024     # 2 grid steps at block_m=512: amortizes step overhead and keeps
    block_m = 512    # the parallel batch axis shardable across v7x's 2 TensorCores.

    key = jax.random.PRNGKey(0)
    kx, kp = jax.random.split(key)
    x = jax.random.normal(kx, (batch, state_dim), dtype=jnp.float32)
    w1, b1, w2, b2 = init_params(kp, state_dim, hidden_dim, action_dim)

    probs = policy_net_forward(x, w1, b1, w2, b2, block_m=block_m)
    probs = jax.block_until_ready(probs)

    # Pure-JAX f32 reference (same math as the PyTorch forward).
    h_ref = jnp.maximum(x @ w1 + b1, 0.0)
    ref = jax.nn.softmax(h_ref @ w2 + b2, axis=1)

    assert probs.shape == (batch, action_dim)
    # fc2 runs with bf16 MXU inputs (f32 accumulation); tolerance reflects that.
    assert jnp.allclose(probs, ref, atol=1e-2, rtol=1e-2)
    # Exact divide -> rows normalized to f32 rounding error.
    assert jnp.allclose(jnp.sum(probs, axis=1), 1.0, atol=1e-5)

    print("KERNEL_OK")
</pallas_src>

<mosaic_0001>
module attributes {stable_mosaic.version = 11 : i64} {
  func.func @policy_net_kernel(%arg0: i32, %arg1: memref<512x4xf32, #tpu.memory_space<vmem>>, %arg2: memref<4x128xf32, #tpu.memory_space<vmem>>, %arg3: memref<1x128xf32, #tpu.memory_space<vmem>>, %arg4: memref<128x128xbf16, #tpu.memory_space<vmem>>, %arg5: memref<1x128xf32, #tpu.memory_space<vmem>>, %arg6: memref<512x8xf32, #tpu.memory_space<vmem>>) attributes {dimension_semantics = [#tpu.dimension_semantics<parallel>], iteration_bounds = array<i64: 2>, scalar_prefetch = 0 : i64, scratch_operands = 0 : i64, tpu.core_type = #tpu.core_type<tc>, window_params = [{transform_indices = @transform_0, window_bounds = array<i64: 512, 4>}, {pipeline_mode = #tpu.pipeline_mode<synchronous>, transform_indices = @transform_1, window_bounds = array<i64: 4, 128>}, {pipeline_mode = #tpu.pipeline_mode<synchronous>, transform_indices = @transform_2, window_bounds = array<i64: 1, 128>}, {pipeline_mode = #tpu.pipeline_mode<synchronous>, transform_indices = @transform_3, window_bounds = array<i64: 128, 128>}, {pipeline_mode = #tpu.pipeline_mode<synchronous>, transform_indices = @transform_4, window_bounds = array<i64: 1, 128>}, {transform_indices = @transform_5, window_bounds = array<i64: 512, 8>}]} {
    %c0 = arith.constant 0 : index
    %c0_0 = arith.constant 0 : index
    %0 = vector.load %arg1[%c0, %c0_0] : memref<512x4xf32, #tpu.memory_space<vmem>>, vector<512x4xf32>
    %c0_1 = arith.constant 0 : index
    %c0_2 = arith.constant 0 : index
    %1 = vector.load %arg2[%c0_1, %c0_2] : memref<4x128xf32, #tpu.memory_space<vmem>>, vector<4x128xf32>
    %c0_3 = arith.constant 0 : index
    %c0_4 = arith.constant 0 : index
    %2 = vector.load %arg3[%c0_3, %c0_4] : memref<1x128xf32, #tpu.memory_space<vmem>>, vector<1x128xf32>
    %3 = vector.extract_strided_slice %0 {offsets = [0, 0], sizes = [512, 1], strides = [1, 1]} : vector<512x4xf32> to vector<512x1xf32>
    %4 = vector.extract_strided_slice %1 {offsets = [0, 0], sizes = [1, 128], strides = [1, 1]} : vector<4x128xf32> to vector<1x128xf32>
    %5 = vector.broadcast %3 : vector<512x1xf32> to vector<512x128xf32>
    %6 = vector.broadcast %4 : vector<1x128xf32> to vector<512x128xf32>
    %7 = arith.mulf %5, %6 : vector<512x128xf32>
    %8 = vector.broadcast %2 : vector<1x128xf32> to vector<512x128xf32>
    %9 = arith.addf %8, %7 : vector<512x128xf32>
    %10 = vector.extract_strided_slice %0 {offsets = [0, 1], sizes = [512, 1], strides = [1, 1]} : vector<512x4xf32> to vector<512x1xf32>
    %11 = vector.extract_strided_slice %1 {offsets = [1, 0], sizes = [1, 128], strides = [1, 1]} : vector<4x128xf32> to vector<1x128xf32>
    %12 = vector.broadcast %10 : vector<512x1xf32> to vector<512x128xf32>
    %13 = vector.broadcast %11 : vector<1x128xf32> to vector<512x128xf32>
    %14 = arith.mulf %12, %13 : vector<512x128xf32>
    %15 = arith.addf %9, %14 : vector<512x128xf32>
    %16 = vector.extract_strided_slice %0 {offsets = [0, 2], sizes = [512, 1], strides = [1, 1]} : vector<512x4xf32> to vector<512x1xf32>
    %17 = vector.extract_strided_slice %1 {offsets = [2, 0], sizes = [1, 128], strides = [1, 1]} : vector<4x128xf32> to vector<1x128xf32>
    %18 = vector.broadcast %16 : vector<512x1xf32> to vector<512x128xf32>
    %19 = vector.broadcast %17 : vector<1x128xf32> to vector<512x128xf32>
    %20 = arith.mulf %18, %19 : vector<512x128xf32>
    %21 = arith.addf %15, %20 : vector<512x128xf32>
    %22 = vector.extract_strided_slice %0 {offsets = [0, 3], sizes = [512, 1], strides = [1, 1]} : vector<512x4xf32> to vector<512x1xf32>
    %23 = vector.extract_strided_slice %1 {offsets = [3, 0], sizes = [1, 128], strides = [1, 1]} : vector<4x128xf32> to vector<1x128xf32>
    %24 = vector.broadcast %22 : vector<512x1xf32> to vector<512x128xf32>
    %25 = vector.broadcast %23 : vector<1x128xf32> to vector<512x128xf32>
    %26 = arith.mulf %24, %25 : vector<512x128xf32>
    %27 = arith.addf %21, %26 : vector<512x128xf32>
    %cst = arith.constant 0.000000e+00 : f32
    %28 = vector.broadcast %cst : f32 to vector<512x128xf32>
    %29 = arith.maximumf %27, %28 : vector<512x128xf32>
    %30 = arith.truncf %29 : vector<512x128xf32> to vector<512x128xbf16>
    %c0_5 = arith.constant 0 : index
    %c0_6 = arith.constant 0 : index
    %31 = vector.load %arg4[%c0_5, %c0_6] : memref<128x128xbf16, #tpu.memory_space<vmem>>, vector<128x128xbf16>
    %cst_7 = arith.constant dense<0.000000e+00> : vector<512x128xf32>
    %32 = tpu.matmul %30, %31, %cst_7 {dimension_numbers = #tpu.dot_dimension_numbers<[1], [0], [0], [1], [0, 0, 1, 1], [], []>} : vector<512x128xbf16>, vector<128x128xbf16>, vector<512x128xf32> -> vector<512x128xf32>
    %c0_8 = arith.constant 0 : index
    %c0_9 = arith.constant 0 : index
    %33 = vector.load %arg5[%c0_8, %c0_9] : memref<1x128xf32, #tpu.memory_space<vmem>>, vector<1x128xf32>
    %34 = vector.broadcast %33 : vector<1x128xf32> to vector<512x128xf32>
    %35 = arith.addf %32, %34 : vector<512x128xf32>
    %cst_10 = arith.constant dense<0xFF800000> : vector<512xf32>
    %36 = vector.multi_reduction <maximumf>, %35, %cst_10 [1] : vector<512x128xf32> to vector<512xf32>
    %37 = vector.shape_cast %36 : vector<512xf32> to vector<512x1xf32>
    %38 = vector.broadcast %37 : vector<512x1xf32> to vector<512x128xf32>
    %39 = arith.subf %35, %38 : vector<512x128xf32>
    %40 = math.exp %39 : vector<512x128xf32>
    %cst_11 = arith.constant dense<0.000000e+00> : vector<512xf32>
    %41 = vector.multi_reduction <add>, %40, %cst_11 [1] : vector<512x128xf32> to vector<512xf32>
    %42 = vector.shape_cast %41 : vector<512xf32> to vector<512x1xf32>
    %43 = vector.extract_strided_slice %40 {offsets = [0, 0], sizes = [512, 8], strides = [1, 1]} : vector<512x128xf32> to vector<512x8xf32>
    %44 = vector.broadcast %42 : vector<512x1xf32> to vector<512x8xf32>
    %45 = arith.divf %43, %44 : vector<512x8xf32>
    %c0_12 = arith.constant 0 : index
    %c0_13 = arith.constant 0 : index
    %46 = vector.load %arg6[%c0_12, %c0_13] : memref<512x8xf32, #tpu.memory_space<vmem>>, vector<512x8xf32>
    tpu.vector_store %arg6[%c0_12, %c0_13], %45 {strides = array<i32>} : memref<512x8xf32, #tpu.memory_space<vmem>>, vector<512x8xf32>,
    return
  }
  func.func @transform_0(%arg0: i32) -> (i32, i32) {
    %c0_i32 = arith.constant 0 : i32
    %c0_i32_0 = arith.constant 0 : i32
    return %arg0, %c0_i32 : i32, i32
  }
  func.func @transform_1(%arg0: i32) -> (i32, i32) {
    %c0_i32 = arith.constant 0 : i32
    %c0_i32_0 = arith.constant 0 : i32
    %c0_i32_1 = arith.constant 0 : i32
    return %c0_i32, %c0_i32_0 : i32, i32
  }
  func.func @transform_2(%arg0: i32) -> (i32, i32) {
    %c0_i32 = arith.constant 0 : i32
    %c0_i32_0 = arith.constant 0 : i32
    %c0_i32_1 = arith.constant 0 : i32
    return %c0_i32, %c0_i32_0 : i32, i32
  }
  func.func @transform_3(%arg0: i32) -> (i32, i32) {
    %c0_i32 = arith.constant 0 : i32
    %c0_i32_0 = arith.constant 0 : i32
    %c0_i32_1 = arith.constant 0 : i32
    return %c0_i32, %c0_i32_0 : i32, i32
  }
  func.func @transform_4(%arg0: i32) -> (i32, i32) {
    %c0_i32 = arith.constant 0 : i32
    %c0_i32_0 = arith.constant 0 : i32
    %c0_i32_1 = arith.constant 0 : i32
    return %c0_i32, %c0_i32_0 : i32, i32
  }
  func.func @transform_5(%arg0: i32) -> (i32, i32) {
    %c0_i32 = arith.constant 0 : i32
    %c0_i32_0 = arith.constant 0 : i32
    return %arg0, %c0_i32 : i32, i32
  }
}

</mosaic_0001>

<llo_original>
// kernel: tpu_custom_call.1
$region0: #{tpu_custom_call.1}
  #allocation0 [shape = 'u32[]', space=smem, size = 0x4, offset = 0x4, fixed_abs, tag = 'smem constant byte address 0x4 - core index']
  #allocation1 [shape = 'u32[144,128]{1,0:T(1,128)}', space=vmem, size = 0x12000, scoped, tag = 'internal scratch']
  %s0 = inlined_call_operand.vmem [shape: f32[1024,4], index: 0, kind: input, shape index: {}]
  %s1 = inlined_call_operand.vmem [shape: f32[4,128], index: 1, kind: input, shape index: {}]
  %s2 = inlined_call_operand.vmem [shape: f32[1,128], index: 2, kind: input, shape index: {}]
  %s3 = inlined_call_operand.vmem [shape: bf16[128,128], index: 3, kind: input, shape index: {}]
  %s4 = inlined_call_operand.vmem [shape: f32[1,128], index: 4, kind: input, shape index: {}]
  %s5 = inlined_call_operand.vmem [shape: f32[1024,8], index: 5, kind: output, shape index: {}]
  %s6 = sld [smem:[#allocation0]]
  $region53: #{tpu_custom_call.1} parent=0
    _
  %s8 = ssub.s32 1, %s6
  %s9 = scalar_select 0, %s8, %s6
  loop: start=0, step=1, limit=4
  $region2: #{tpu_custom_call.1} parent=0 // loop_pre_header
    _
  $region3: #{tpu_custom_call.1} parent=0 // loop_header
    %s11 = sphi 0, %s15
    %p12 = scmp.ge.s32.totalorder %s11, 4
    %s21 = sphi 0, %s23
    %s24 = sphi 0, %s21
    %s25 = sphi 0, %s24
    %s41 = sphi 0, %s25
    %s45 = sphi 0, %s45
    %s47 = sphi 0, %s45
    %s48 = sphi 0, %s47
    %s62 = sphi 0, %s48
    %s66 = sphi 0, %s66
    %s68 = sphi 0, %s66
    %s69 = sphi 0, %s68
    %s83 = sphi 0, %s69
    %s87 = sphi 0, %s87
    %s89 = sphi 0, %s87
    %s90 = sphi 0, %s89
    %s104 = sphi 0, %s90
    %s108 = sphi 0, %s108
    %s110 = sphi 0, %s108
    %s111 = sphi 0, %s110
    %s125 = sphi 0, %s111
    %s131 = sphi 0, %s133
    %s134 = sphi 0, %s131
    %s135 = sphi 0, %s134
    %s151 = sphi 0, %s135
  $region4: #{tpu_custom_call.1} parent=0 // loop_header_branch
    %14 = sbr.rel (%p12) target = $region8
  $region5: #{tpu_custom_call.1} parent=0 // loop_body
    %s16 = ssub.s32 %s11, 1
    %s17 = ssub.s32 %s11, 2
    %s18 = sadd.s32 %s11, 1
    %s19 = ssub.s32 %s11, %s18
    %p20 = scmp.eq.s32.totalorder %s19, 0
    %s22 = sadd.s32 %s21, 1
    %s23 = scalar_select %p20, %s21, %s22
    %p26 = pneg %p20
    %p27 = scmp.eq.s32.totalorder %s11, 1
    %p28 = por %p26, %p27
    %p29 = scmp.ne.s32.totalorder %s21, %s24
    %p30 = scmp.eq.s32.totalorder %s11, 0
    %p31 = por %p29, %p30
    %p32 = scmp.ne.s32.totalorder %s21, %s24
    %p33 = scmp.eq.s32.totalorder %s16, 1
    %p34 = por %p32, %p33
    %p35 = scmp.ne.s32.totalorder %s24, %s25
    %p36 = scmp.eq.s32.totalorder %s16, 0
    %p37 = por %p35, %p36
    %p38 = scmp.ne.s32.totalorder %s24, %s25
    %p39 = scmp.eq.s32.totalorder %s17, 1
    %p40 = por %p38, %p39
    %p42 = scmp.ne.s32.totalorder %s25, %s41
    %p43 = scmp.eq.s32.totalorder %s17, 0
    %p44 = por %p42, %p43
    %s46 = sadd.s32 %s45, 1
    %p49 = scmp.eq.s32.totalorder %s11, 1
    %p50 = scmp.ne.s32.totalorder %s45, %s47
    %p51 = scmp.eq.s32.totalorder %s11, 0
    %p52 = por %p50, %p51
    %p53 = scmp.ne.s32.totalorder %s45, %s47
    %p54 = scmp.eq.s32.totalorder %s16, 1
    %p55 = por %p53, %p54
    %p56 = scmp.ne.s32.totalorder %s47, %s48
    %p57 = scmp.eq.s32.totalorder %s16, 0
    %p58 = por %p56, %p57
    %p59 = scmp.ne.s32.totalorder %s47, %s48
    %p60 = scmp.eq.s32.totalorder %s17, 1
    %p61 = por %p59, %p60
    %p63 = scmp.ne.s32.totalorder %s48, %s62
    %p64 = scmp.eq.s32.totalorder %s17, 0
    %p65 = por %p63, %p64
    %s67 = sadd.s32 %s66, 1
    %p70 = scmp.eq.s32.totalorder %s11, 1
    %p71 = scmp.ne.s32.totalorder %s66, %s68
    %p72 = scmp.eq.s32.totalorder %s11, 0
    %p73 = por %p71, %p72
    %p74 = scmp.ne.s32.totalorder %s66, %s68
    %p75 = scmp.eq.s32.totalorder %s16, 1
    %p76 = por %p74, %p75
    %p77 = scmp.ne.s32.totalorder %s68, %s69
    %p78 = scmp.eq.s32.totalorder %s16, 0
    %p79 = por %p77, %p78
    %p80 = scmp.ne.s32.totalorder %s68, %s69
    %p81 = scmp.eq.s32.totalorder %s17, 1
    %p82 = por %p80, %p81
    %p84 = scmp.ne.s32.totalorder %s69, %s83
    %p85 = scmp.eq.s32.totalorder %s17, 0
    %p86 = por %p84, %p85
    %s88 = sadd.s32 %s87, 1
    %p91 = scmp.eq.s32.totalorder %s11, 1
    %p92 = scmp.ne.s32.totalorder %s87, %s89
    %p93 = scmp.eq.s32.totalorder %s11, 0
    %p94 = por %p92, %p93
    %p95 = scmp.ne.s32.totalorder %s87, %s89
    %p96 = scmp.eq.s32.totalorder %s16, 1
    %p97 = por %p95, %p96
    %p98 = scmp.ne.s32.totalorder %s89, %s90
    %p99 = scmp.eq.s32.totalorder %s16, 0
    %p100 = por %p98, %p99
    %p101 = scmp.ne.s32.totalorder %s89, %s90
    %p102 = scmp.eq.s32.totalorder %s17, 1
    %p103 = por %p101, %p102
    %p105 = scmp.ne.s32.totalorder %s90, %s104
    %p106 = scmp.eq.s32.totalorder %s17, 0
    %p107 = por %p105, %p106
    %s109 = sadd.s32 %s108, 1
    %p112 = scmp.eq.s32.totalorder %s11, 1
    %p113 = scmp.ne.s32.totalorder %s108, %s110
    %p114 = scmp.eq.s32.totalorder %s11, 0
    %p115 = por %p113, %p114
    %p116 = scmp.ne.s32.totalorder %s108, %s110
    %p117 = scmp.eq.s32.totalorder %s16, 1
    %p118 = por %p116, %p117
    %p119 = scmp.ne.s32.totalorder %s110, %s111
    %p120 = scmp.eq.s32.totalorder %s16, 0
    %p121 = por %p119, %p120
    %p122 = scmp.ne.s32.totalorder %s110, %s111
    %p123 = scmp.eq.s32.totalorder %s17, 1
    %p124 = por %p122, %p123
    %p126 = scmp.ne.s32.totalorder %s111, %s125
    %p127 = scmp.eq.s32.totalorder %s17, 0
    %p128 = por %p126, %p127
    %s129 = ssub.s32 %s11, %s18
    %p130 = scmp.eq.s32.totalorder %s129, 0
    %s132 = sadd.s32 %s131, 1
    %s133 = scalar_select %p130, %s131, %s132
    %p136 = pneg %p130
    %p137 = scmp.eq.s32.totalorder %s11, 1
    %p138 = por %p136, %p137
    %p139 = scmp.ne.s32.totalorder %s131, %s134
    %p140 = scmp.eq.s32.totalorder %s11, 0
    %p141 = por %p139, %p140
    %p142 = scmp.ne.s32.totalorder %s131, %s134
    %p143 = scmp.eq.s32.totalorder %s16, 1
    %p144 = por %p142, %p143
    %p145 = scmp.ne.s32.totalorder %s134, %s135
    %p146 = scmp.eq.s32.totalorder %s16, 0
    %p147 = por %p145, %p146
    %p148 = scmp.ne.s32.totalorder %s134, %s135
    %p149 = scmp.eq.s32.totalorder %s17, 1
    %p150 = por %p148, %p149
    %p152 = scmp.ne.s32.totalorder %s135, %s151
    %p153 = scmp.eq.s32.totalorder %s17, 0
    %p154 = por %p152, %p153
    %p155 = scmp.le.s32.totalorder 1, %s11
    %p156 = scmp.lt.s32.totalorder %s11, 3
    %p157 = pnand %p155, %p156
    %p158 = pneg %p157
    // Predicated region
    $region9: #{tpu_custom_call.1} parent=5 // pred_check
      _
    $region10: #{tpu_custom_call.1} parent=5 // pred_check_branch
      %160 = sbr.rel (%p157) target = $region12
    $region11: #{tpu_custom_call.1} parent=5 // pred_region
      %s161 = ssub.s32 %s11, 1
      // Predicated region
      $region13: #{tpu_custom_call.1} parent=11 // pred_check
        %p162 = pneg %p58
      $region14: #{tpu_custom_call.1} parent=11 // pred_check_branch
        %164 = sbr.rel (%p162) target = $region16
      $region15: #{tpu_custom_call.1} parent=11 // pred_region
        _
      $region16: #{tpu_custom_call.1} parent=11 // pred_fallthru
        _
      // Predicated region
      $region17: #{tpu_custom_call.1} parent=11 // pred_check
        %p165 = pneg %p79
      $region18: #{tpu_custom_call.1} parent=11 // pred_check_branch
        %167 = sbr.rel (%p165) target = $region20
      $region19: #{tpu_custom_call.1} parent=11 // pred_region
        _
      $region20: #{tpu_custom_call.1} parent=11 // pred_fallthru
        _
      // Predicated region
      $region21: #{tpu_custom_call.1} parent=11 // pred_check
        %p168 = pneg %p100
      $region22: #{tpu_custom_call.1} parent=11 // pred_check_branch
        %170 = sbr.rel (%p168) target = $region24
      $region23: #{tpu_custom_call.1} parent=11 // pred_region
        _
      $region24: #{tpu_custom_call.1} parent=11 // pred_fallthru
        _
      // Predicated region
      $region25: #{tpu_custom_call.1} parent=11 // pred_check
        %p171 = pneg %p121
      $region26: #{tpu_custom_call.1} parent=11 // pred_check_branch
        %173 = sbr.rel (%p171) target = $region28
      $region27: #{tpu_custom_call.1} parent=11 // pred_region
        _
      $region28: #{tpu_custom_call.1} parent=11 // pred_fallthru
        _
    $region12: #{tpu_custom_call.1} parent=5 // pred_fallthru
      _
    %p174 = scmp.lt.s32.totalorder %s11, 2
    // Predicated region
    $region29: #{tpu_custom_call.1} parent=5 // pred_check
      %p175 = pneg %p174
    $region30: #{tpu_custom_call.1} parent=5 // pred_check_branch
      %177 = sbr.rel (%p175) target = $region32
    $region31: #{tpu_custom_call.1} parent=5 // pred_region
      // Predicated region
      $region33: #{tpu_custom_call.1} parent=31 // pred_check
        %p178 = pneg %p31
      $region34: #{tpu_custom_call.1} parent=31 // pred_check_branch
        %180 = sbr.rel (%p178) target = $region36
      $region35: #{tpu_custom_call.1} parent=31 // pred_region
        %s181 = smul.u32 64, %s11
        %p182 = scmp.lt.s32.totalorder %s181, 127
        %s183 = scalar_select %p182, %s181, 127
        %s184 = smul.addr %s183, 8
        %s185 = scalar_lea.vmem %s0, %s184
        %s186 = smul.u32 64, %s11
      $region36: #{tpu_custom_call.1} parent=31 // pred_fallthru
        _
    $region32: #{tpu_custom_call.1} parent=5 // pred_fallthru
      _
    %p187 = scmp.le.s32.totalorder 1, %s11
    %p188 = scmp.lt.s32.totalorder %s11, 3
    %p189 = pnand %p187, %p188
    %p190 = pneg %p189
    // Predicated region
    $region37: #{tpu_custom_call.1} parent=5 // pred_check
      _
    $region38: #{tpu_custom_call.1} parent=5 // pred_check_branch
      %192 = sbr.rel (%p189) target = $region40
    $region39: #{tpu_custom_call.1} parent=5 // pred_region
      %s193 = ssub.s32 %s11, 1
      %s194 = smul.u32 64, %s16
      %p195 = scmp.lt.s32.totalorder %s194, 127
      %s196 = scalar_select %p195, %s194, 127
      %s197 = smul.addr %s196, 8
      %s198 = scalar_lea.vmem %s0, %s197
      %p199 = pneg %p37
      %p200 = pneg %p34
      %p201 = pneg %p58
      %p202 = pneg %p55
      %p203 = pneg %p79
      %p204 = pneg %p76
      %p205 = pneg %p100
      %p206 = pneg %p97
      %p207 = pneg %p121
      %p208 = pneg %p118
      %p209 = pneg %p147
      %p210 = pneg %p144
      %s211 = smul.u32 64, %s16
      %p212 = scmp.lt.s32.totalorder %s211, 127
      %s213 = scalar_select %p212, %s211, 127
      %s214 = smul.addr %s213, 8
      %s215 = scalar_lea.vmem %s5, %s214
      %s216 = smul.u32 64, %s16
      %p217 = scmp.lt.s32.totalorder %s216, 127
      %s218 = scalar_select %p217, %s216, 127
      %s219 = smul.addr %s218, 8
      %s220 = scalar_lea.vmem %s0, %s219
      %s221 = smul.u32 64, %s16
      %s222 = smul.u32 64, %s16
      %p223 = scmp.lt.s32.totalorder %s222, 127
      %s224 = scalar_select %p223, %s222, 127
      %s225 = smul.addr %s224, 8
      %s226 = scalar_lea.vmem %s5, %s225
      %s227 = smul.u32 64, %s16
      %v229 = vld [vmem:[%s220] sm:$0xff]
      %v230 = vld [vmem:[%s220 + $0x8] sm:$0xff]
      %v231 = vld [vmem:[%s220 + $0x10] sm:$0xff]
      %v232 = vld [vmem:[%s220 + $0x18] sm:$0xff]
      %v233 = vld [vmem:[%s220 + $0x20] sm:$0xff]
      %v234 = vld [vmem:[%s220 + $0x28] sm:$0xff]
      %v235 = vld [vmem:[%s220 + $0x30] sm:$0xff]
      %v236 = vld [vmem:[%s220 + $0x38] sm:$0xff]
      %v237 = vld [vmem:[%s220 + $0x40] sm:$0xff]
      %v238 = vld [vmem:[%s220 + $0x48] sm:$0xff]
      %v239 = vld [vmem:[%s220 + $0x50] sm:$0xff]
      %v240 = vld [vmem:[%s220 + $0x58] sm:$0xff]
      %v241 = vld [vmem:[%s220 + $0x60] sm:$0xff]
      %v242 = vld [vmem:[%s220 + $0x68] sm:$0xff]
      %v243 = vld [vmem:[%s220 + $0x70] sm:$0xff]
      %v244 = vld [vmem:[%s220 + $0x78] sm:$0xff]
      %v245 = vld [vmem:[%s220 + $0x80] sm:$0xff]
      %v246 = vld [vmem:[%s220 + $0x88] sm:$0xff]
      %v247 = vld [vmem:[%s220 + $0x90] sm:$0xff]
      %v248 = vld [vmem:[%s220 + $0x98] sm:$0xff]
      %v249 = vld [vmem:[%s220 + $0xa0] sm:$0xff]
      %v250 = vld [vmem:[%s220 + $0xa8] sm:$0xff]
      %v251 = vld [vmem:[%s220 + $0xb0] sm:$0xff]
      %v252 = vld [vmem:[%s220 + $0xb8] sm:$0xff]
      %v253 = vld [vmem:[%s220 + $0xc0] sm:$0xff]
      %v254 = vld [vmem:[%s220 + $0xc8] sm:$0xff]
      %v255 = vld [vmem:[%s220 + $0xd0] sm:$0xff]
      %v256 = vld [vmem:[%s220 + $0xd8] sm:$0xff]
      %v257 = vld [vmem:[%s220 + $0xe0] sm:$0xff]
      %v258 = vld [vmem:[%s220 + $0xe8] sm:$0xff]
      %v259 = vld [vmem:[%s220 + $0xf0] sm:$0xff]
      %v260 = vld [vmem:[%s220 + $0xf8] sm:$0xff]
      %v261 = vld [vmem:[%s220 + $0x100] sm:$0xff]
      %v262 = vld [vmem:[%s220 + $0x108] sm:$0xff]
      %v263 = vld [vmem:[%s220 + $0x110] sm:$0xff]
      %v264 = vld [vmem:[%s220 + $0x118] sm:$0xff]
      %v265 = vld [vmem:[%s220 + $0x120] sm:$0xff]
      %v266 = vld [vmem:[%s220 + $0x128] sm:$0xff]
      %v267 = vld [vmem:[%s220 + $0x130] sm:$0xff]
      %v268 = vld [vmem:[%s220 + $0x138] sm:$0xff]
      %v269 = vld [vmem:[%s220 + $0x140] sm:$0xff]
      %v270 = vld [vmem:[%s220 + $0x148] sm:$0xff]
      %v271 = vld [vmem:[%s220 + $0x150] sm:$0xff]
      %v272 = vld [vmem:[%s220 + $0x158] sm:$0xff]
      %v273 = vld [vmem:[%s220 + $0x160] sm:$0xff]
      %v274 = vld [vmem:[%s220 + $0x168] sm:$0xff]
      %v275 = vld [vmem:[%s220 + $0x170] sm:$0xff]
      %v276 = vld [vmem:[%s220 + $0x178] sm:$0xff]
      %v277 = vld [vmem:[%s220 + $0x180] sm:$0xff]
      %v278 = vld [vmem:[%s220 + $0x188] sm:$0xff]
      %v279 = vld [vmem:[%s220 + $0x190] sm:$0xff]
      %v280 = vld [vmem:[%s220 + $0x198] sm:$0xff]
      %v281 = vld [vmem:[%s220 + $0x1a0] sm:$0xff]
      %v282 = vld [vmem:[%s220 + $0x1a8] sm:$0xff]
      %v283 = vld [vmem:[%s220 + $0x1b0] sm:$0xff]
      %v284 = vld [vmem:[%s220 + $0x1b8] sm:$0xff]
      %v285 = vld [vmem:[%s220 + $0x1c0] sm:$0xff]
      %v286 = vld [vmem:[%s220 + $0x1c8] sm:$0xff]
      %v287 = vld [vmem:[%s220 + $0x1d0] sm:$0xff]
      %v288 = vld [vmem:[%s220 + $0x1d8] sm:$0xff]
      %v289 = vld [vmem:[%s220 + $0x1e0] sm:$0xff]
      %v290 = vld [vmem:[%s220 + $0x1e8] sm:$0xff]
      %v291 = vld [vmem:[%s220 + $0x1f0] sm:$0xff]
      %v292 = vld [vmem:[%s220 + $0x1f8] sm:$0xff]
      %v293 = vld [vmem:[%s1] sm:$0xf]
      %v294 = vld [vmem:[%s2] sm:$0x1]
      %296 = vset.pattern.permute.xlu0 0
      %297 = vperm.xlu0 %296, %v229
      %v298 = vpop.permute.xlu0 %297
      %301 = vset.pattern.permute.xlu0 0
      %302 = vperm.xlu0 %301, %v230
      %v303 = vpop.permute.xlu0 %302
      %306 = vset.pattern.permute.xlu0 0
      %307 = vperm.xlu0 %306, %v231
      %v308 = vpop.permute.xlu0 %307
      %311 = vset.pattern.permute.xlu0 0
      %312 = vperm.xlu0 %311, %v232
      %v313 = vpop.permute.xlu0 %312
      %316 = vset.pattern.permute.xlu0 0
      %317 = vperm.xlu0 %316, %v233
      %v318 = vpop.permute.xlu0 %317
      %321 = vset.pattern.permute.xlu0 0
      %322 = vperm.xlu0 %321, %v234
      %v323 = vpop.permute.xlu0 %322
      %326 = vset.pattern.permute.xlu0 0
      %327 = vperm.xlu0 %326, %v235
      %v328 = vpop.permute.xlu0 %327
      %331 = vset.pattern.permute.xlu0 0
      %332 = vperm.xlu0 %331, %v236
      %v333 = vpop.permute.xlu0 %332
      %336 = vset.pattern.permute.xlu0 0
      %337 = vperm.xlu0 %336, %v237
      %v338 = vpop.permute.xlu0 %337
      %341 = vset.pattern.permute.xlu0 0
      %342 = vperm.xlu0 %341, %v238
      %v343 = vpop.permute.xlu0 %342
      %346 = vset.pattern.permute.xlu0 0
      %347 = vperm.xlu0 %346, %v239
      %v348 = vpop.permute.xlu0 %347
      %351 = vset.pattern.permute.xlu0 0
      %352 = vperm.xlu0 %351, %v240
      %v353 = vpop.permute.xlu0 %352
      %356 = vset.pattern.permute.xlu0 0
      %357 = vperm.xlu0 %356, %v241
      %v358 = vpop.permute.xlu0 %357
      %361 = vset.pattern.permute.xlu0 0
      %362 = vperm.xlu0 %361, %v242
      %v363 = vpop.permute.xlu0 %362
      %366 = vset.pattern.permute.xlu0 0
      %367 = vperm.xlu0 %366, %v243
      %v368 = vpop.permute.xlu0 %367
      %371 = vset.pattern.permute.xlu0 0
      %372 = vperm.xlu0 %371, %v244
      %v373 = vpop.permute.xlu0 %372
      %376 = vset.pattern.permute.xlu0 0
      %377 = vperm.xlu0 %376, %v245
      %v378 = vpop.permute.xlu0 %377
      %381 = vset.pattern.permute.xlu0 0
      %382 = vperm.xlu0 %381, %v246
      %v383 = vpop.permute.xlu0 %382
      %386 = vset.pattern.permute.xlu0 0
      %387 = vperm.xlu0 %386, %v247
      %v388 = vpop.permute.xlu0 %387
      %391 = vset.pattern.permute.xlu0 0
      %392 = vperm.xlu0 %391, %v248
      %v393 = vpop.permute.xlu0 %392
      %396 = vset.pattern.permute.xlu0 0
      %397 = vperm.xlu0 %396, %v249
      %v398 = vpop.permute.xlu0 %397
      %401 = vset.pattern.permute.xlu0 0
      %402 = vperm.xlu0 %401, %v250
      %v403 = vpop.permute.xlu0 %402
      %406 = vset.pattern.permute.xlu0 0
      %407 = vperm.xlu0 %406, %v251
      %v408 = vpop.permute.xlu0 %407
      %411 = vset.pattern.permute.xlu0 0
      %412 = vperm.xlu0 %411, %v252
      %v413 = vpop.permute.xlu0 %412
      %416 = vset.pattern.permute.xlu0 0
      %417 = vperm.xlu0 %416, %v253
      %v418 = vpop.permute.xlu0 %417
      %421 = vset.pattern.permute.xlu0 0
      %422 = vperm.xlu0 %421, %v254
      %v423 = vpop.permute.xlu0 %422
      %426 = vset.pattern.permute.xlu0 0
      %427 = vperm.xlu0 %426, %v255
      %v428 = vpop.permute.xlu0 %427
      %431 = vset.pattern.permute.xlu0 0
      %432 = vperm.xlu0 %431, %v256
      %v433 = vpop.permute.xlu0 %432
      %436 = vset.pattern.permute.xlu0 0
      %437 = vperm.xlu0 %436, %v257
      %v438 = vpop.permute.xlu0 %437
      %441 = vset.pattern.permute.xlu0 0
      %442 = vperm.xlu0 %441, %v258
      %v443 = vpop.permute.xlu0 %442
      %446 = vset.pattern.permute.xlu0 0
      %447 = vperm.xlu0 %446, %v259
      %v448 = vpop.permute.xlu0 %447
      %451 = vset.pattern.permute.xlu0 0
      %452 = vperm.xlu0 %451, %v260
      %v453 = vpop.permute.xlu0 %452
      %456 = vset.pattern.permute.xlu0 0
      %457 = vperm.xlu0 %456, %v261
      %v458 = vpop.permute.xlu0 %457
      %461 = vset.pattern.permute.xlu0 0
      %462 = vperm.xlu0 %461, %v262
      %v463 = vpop.permute.xlu0 %462
      %466 = vset.pattern.permute.xlu0 0
      %467 = vperm.xlu0 %466, %v263
      %v468 = vpop.permute.xlu0 %467
      %471 = vset.pattern.permute.xlu0 0
      %472 = vperm.xlu0 %471, %v264
      %v473 = vpop.permute.xlu0 %472
      %476 = vset.pattern.permute.xlu0 0
      %477 = vperm.xlu0 %476, %v265
      %v478 = vpop.permute.xlu0 %477
      %481 = vset.pattern.permute.xlu0 0
      %482 = vperm.xlu0 %481, %v266
      %v483 = vpop.permute.xlu0 %482
      %486 = vset.pattern.permute.xlu0 0
      %487 = vperm.xlu0 %486, %v267
      %v488 = vpop.permute.xlu0 %487
      %491 = vset.pattern.permute.xlu0 0
      %492 = vperm.xlu0 %491, %v268
      %v493 = vpop.permute.xlu0 %492
      %496 = vset.pattern.permute.xlu0 0
      %497 = vperm.xlu0 %496, %v269
      %v498 = vpop.permute.xlu0 %497
      %501 = vset.pattern.permute.xlu0 0
      %502 = vperm.xlu0 %501, %v270
      %v503 = vpop.permute.xlu0 %502
      %506 = vset.pattern.permute.xlu0 0
      %507 = vperm.xlu0 %506, %v271
      %v508 = vpop.permute.xlu0 %507
      %511 = vset.pattern.permute.xlu0 0
      %512 = vperm.xlu0 %511, %v272
      %v513 = vpop.permute.xlu0 %512
      %516 = vset.pattern.permute.xlu0 0
      %517 = vperm.xlu0 %516, %v273
      %v518 = vpop.permute.xlu0 %517
      %521 = vset.pattern.permute.xlu0 0
      %522 = vperm.xlu0 %521, %v274
      %v523 = vpop.permute.xlu0 %522
      %526 = vset.pattern.permute.xlu0 0
      %527 = vperm.xlu0 %526, %v275
      %v528 = vpop.permute.xlu0 %527
      %531 = vset.pattern.permute.xlu0 0
      %532 = vperm.xlu0 %531, %v276
      %v533 = vpop.permute.xlu0 %532
      %536 = vset.pattern.permute.xlu0 0
      %537 = vperm.xlu0 %536, %v277
      %v538 = vpop.permute.xlu0 %537
      %541 = vset.pattern.permute.xlu0 0
      %542 = vperm.xlu0 %541, %v278
      %v543 = vpop.permute.xlu0 %542
      %546 = vset.pattern.permute.xlu0 0
      %547 = vperm.xlu0 %546, %v279
      %v548 = vpop.permute.xlu0 %547
      %551 = vset.pattern.permute.xlu0 0
      %552 = vperm.xlu0 %551, %v280
      %v553 = vpop.permute.xlu0 %552
      %556 = vset.pattern.permute.xlu0 0
      %557 = vperm.xlu0 %556, %v281
      %v558 = vpop.permute.xlu0 %557
      %561 = vset.pattern.permute.xlu0 0
      %562 = vperm.xlu0 %561, %v282
      %v563 = vpop.permute.xlu0 %562
      %566 = vset.pattern.permute.xlu0 0
      %567 = vperm.xlu0 %566, %v283
      %v568 = vpop.permute.xlu0 %567
      %571 = vset.pattern.permute.xlu0 0
      %572 = vperm.xlu0 %571, %v284
      %v573 = vpop.permute.xlu0 %572
      %576 = vset.pattern.permute.xlu0 0
      %577 = vperm.xlu0 %576, %v285
      %v578 = vpop.permute.xlu0 %577
      %581 = vset.pattern.permute.xlu0 0
      %582 = vperm.xlu0 %581, %v286
      %v583 = vpop.permute.xlu0 %582
      %586 = vset.pattern.permute.xlu0 0
      %587 = vperm.xlu0 %586, %v287
      %v588 = vpop.permute.xlu0 %587
      %591 = vset.pattern.permute.xlu0 0
      %592 = vperm.xlu0 %591, %v288
      %v593 = vpop.permute.xlu0 %592
      %596 = vset.pattern.permute.xlu0 0
      %597 = vperm.xlu0 %596, %v289
      %v598 = vpop.permute.xlu0 %597
      %601 = vset.pattern.permute.xlu0 0
      %602 = vperm.xlu0 %601, %v290
      %v603 = vpop.permute.xlu0 %602
      %606 = vset.pattern.permute.xlu0 0
      %607 = vperm.xlu0 %606, %v291
      %v608 = vpop.permute.xlu0 %607
      %611 = vset.pattern.permute.xlu0 0
      %612 = vperm.xlu0 %611, %v292
      %v613 = vpop.permute.xlu0 %612
      %v615 = vlaneseq
      %v616 = vshrl.u32 %v615, 7
      %v617 = vsub.s32 0, %v616
      %v618 = vrot.slane %v293, %v617
      %v619 = vmul.f32 %v298, %v618
      %v620 = vmul.f32 %v303, %v618
      %v621 = vmul.f32 %v308, %v618
      %v622 = vmul.f32 %v313, %v618
      %v623 = vmul.f32 %v318, %v618
      %v624 = vmul.f32 %v323, %v618
      %v625 = vmul.f32 %v328, %v618
      %v626 = vmul.f32 %v333, %v618
      %v627 = vmul.f32 %v338, %v618
      %v628 = vmul.f32 %v343, %v618
      %v629 = vmul.f32 %v348, %v618
      %v630 = vmul.f32 %v353, %v618
      %v631 = vmul.f32 %v358, %v618
      %v632 = vmul.f32 %v363, %v618
      %v633 = vmul.f32 %v368, %v618
      %v634 = vmul.f32 %v373, %v618
      %v635 = vmul.f32 %v378, %v618
      %v636 = vmul.f32 %v383, %v618
      %v637 = vmul.f32 %v388, %v618
      %v638 = vmul.f32 %v393, %v618
      %v639 = vmul.f32 %v398, %v618
      %v640 = vmul.f32 %v403, %v618
      %v641 = vmul.f32 %v408, %v618
      %v642 = vmul.f32 %v413, %v618
      %v643 = vmul.f32 %v418, %v618
      %v644 = vmul.f32 %v423, %v618
      %v645 = vmul.f32 %v428, %v618
      %v646 = vmul.f32 %v433, %v618
      %v647 = vmul.f32 %v438, %v618
      %v648 = vmul.f32 %v443, %v618
      %v649 = vmul.f32 %v448, %v618
      %v650 = vmul.f32 %v453, %v618
      %v651 = vmul.f32 %v458, %v618
      %v652 = vmul.f32 %v463, %v618
      %v653 = vmul.f32 %v468, %v618
      %v654 = vmul.f32 %v473, %v618
      %v655 = vmul.f32 %v478, %v618
      %v656 = vmul.f32 %v483, %v618
      %v657 = vmul.f32 %v488, %v618
      %v658 = vmul.f32 %v493, %v618
      %v659 = vmul.f32 %v498, %v618
      %v660 = vmul.f32 %v503, %v618
      %v661 = vmul.f32 %v508, %v618
      %v662 = vmul.f32 %v513, %v618
      %v663 = vmul.f32 %v518, %v618
      %v664 = vmul.f32 %v523, %v618
      %v665 = vmul.f32 %v528, %v618
      %v666 = vmul.f32 %v533, %v618
      %v667 = vmul.f32 %v538, %v618
      %v668 = vmul.f32 %v543, %v618
      %v669 = vmul.f32 %v548, %v618
      %v670 = vmul.f32 %v553, %v618
      %v671 = vmul.f32 %v558, %v618
      %v672 = vmul.f32 %v563, %v618
      %v673 = vmul.f32 %v568, %v618
      %v674 = vmul.f32 %v573, %v618
      %v675 = vmul.f32 %v578, %v618
      %v676 = vmul.f32 %v583, %v618
      %v677 = vmul.f32 %v588, %v618
      %v678 = vmul.f32 %v593, %v618
      %v679 = vmul.f32 %v598, %v618
      %v680 = vmul.f32 %v603, %v618
      %v681 = vmul.f32 %v608, %v618
      %v682 = vmul.f32 %v613, %v618
      %v684 = vlaneseq
      %v685 = vshrl.u32 %v684, 7
      %v686 = vsub.s32 0, %v685
      %v687 = vrot.slane %v294, %v686
      %v689 = vadd.f32 %v687, %v619
      %v690 = vadd.f32 %v687, %v620
      %v691 = vadd.f32 %v687, %v621
      %v692 = vadd.f32 %v687, %v622
      %v693 = vadd.f32 %v687, %v623
      %v694 = vadd.f32 %v687, %v624
      %v695 = vadd.f32 %v687, %v625
      %v696 = vadd.f32 %v687, %v626
      %v697 = vadd.f32 %v687, %v627
      %v698 = vadd.f32 %v687, %v628
      %v699 = vadd.f32 %v687, %v629
      %v700 = vadd.f32 %v687, %v630
      %v701 = vadd.f32 %v687, %v631
      %v702 = vadd.f32 %v687, %v632
      %v703 = vadd.f32 %v687, %v633
      %v704 = vadd.f32 %v687, %v634
      %v705 = vadd.f32 %v687, %v635
      %v706 = vadd.f32 %v687, %v636
      %v707 = vadd.f32 %v687, %v637
      %v708 = vadd.f32 %v687, %v638
      %v709 = vadd.f32 %v687, %v639
      %v710 = vadd.f32 %v687, %v640
      %v711 = vadd.f32 %v687, %v641
      %v712 = vadd.f32 %v687, %v642
      %v713 = vadd.f32 %v687, %v643
      %v714 = vadd.f32 %v687, %v644
      %v715 = vadd.f32 %v687, %v645
      %v716 = vadd.f32 %v687, %v646
      %v717 = vadd.f32 %v687, %v647
      %v718 = vadd.f32 %v687, %v648
      %v719 = vadd.f32 %v687, %v649
      %v720 = vadd.f32 %v687, %v650
      %v721 = vadd.f32 %v687, %v651
      %v722 = vadd.f32 %v687, %v652
      %v723 = vadd.f32 %v687, %v653
      %v724 = vadd.f32 %v687, %v654
      %v725 = vadd.f32 %v687, %v655
      %v726 = vadd.f32 %v687, %v656
      %v727 = vadd.f32 %v687, %v657
      %v728 = vadd.f32 %v687, %v658
      %v729 = vadd.f32 %v687, %v659
      %v730 = vadd.f32 %v687, %v660
      %v731 = vadd.f32 %v687, %v661
      %v732 = vadd.f32 %v687, %v662
      %v733 = vadd.f32 %v687, %v663
      %v734 = vadd.f32 %v687, %v664
      %v735 = vadd.f32 %v687, %v665
      %v736 = vadd.f32 %v687, %v666
      %v737 = vadd.f32 %v687, %v667
      %v738 = vadd.f32 %v687, %v668
      %v739 = vadd.f32 %v687, %v669
      %v740 = vadd.f32 %v687, %v670
      %v741 = vadd.f32 %v687, %v671
      %v742 = vadd.f32 %v687, %v672
      %v743 = vadd.f32 %v687, %v673
      %v744 = vadd.f32 %v687, %v674
      %v745 = vadd.f32 %v687, %v675
      %v746 = vadd.f32 %v687, %v676
      %v747 = vadd.f32 %v687, %v677
      %v748 = vadd.f32 %v687, %v678
      %v749 = vadd.f32 %v687, %v679
      %v750 = vadd.f32 %v687, %v680
      %v751 = vadd.f32 %v687, %v681
      %v752 = vadd.f32 %v687, %v682
      %753 = vset.pattern.permute.xlu0 1
      %754 = vperm.xlu0 %753, %v229
      %v755 = vpop.permute.xlu0 %754
      %757 = vset.pattern.permute.xlu0 1
      %758 = vperm.xlu0 %757, %v230
      %v759 = vpop.permute.xlu0 %758
      %761 = vset.pattern.permute.xlu0 1
      %762 = vperm.xlu0 %761, %v231
      %v763 = vpop.permute.xlu0 %762
      %765 = vset.pattern.permute.xlu0 1
      %766 = vperm.xlu0 %765, %v232
      %v767 = vpop.permute.xlu0 %766
      %769 = vset.pattern.permute.xlu0 1
      %770 = vperm.xlu0 %769, %v233
      %v771 = vpop.permute.xlu0 %770
      %773 = vset.pattern.permute.xlu0 1
      %774 = vperm.xlu0 %773, %v234
      %v775 = vpop.permute.xlu0 %774
      %777 = vset.pattern.permute.xlu0 1
      %778 = vperm.xlu0 %777, %v235
      %v779 = vpop.permute.xlu0 %778
      %781 = vset.pattern.permute.xlu0 1
      %782 = vperm.xlu0 %781, %v236
      %v783 = vpop.permute.xlu0 %782
      %785 = vset.pattern.permute.xlu0 1
      %786 = vperm.xlu0 %785, %v237
      %v787 = vpop.permute.xlu0 %786
      %789 = vset.pattern.permute.xlu0 1
      %790 = vperm.xlu0 %789, %v238
      %v791 = vpop.permute.xlu0 %790
      %793 = vset.pattern.permute.xlu0 1
      %794 = vperm.xlu0 %793, %v239
      %v795 = vpop.permute.xlu0 %794
      %797 = vset.pattern.permute.xlu0 1
      %798 = vperm.xlu0 %797, %v240
      %v799 = vpop.permute.xlu0 %798
      %801 = vset.pattern.permute.xlu0 1
      %802 = vperm.xlu0 %801, %v241
      %v803 = vpop.permute.xlu0 %802
      %805 = vset.pattern.permute.xlu0 1
      %806 = vperm.xlu0 %805, %v242
      %v807 = vpop.permute.xlu0 %806
      %809 = vset.pattern.permute.xlu0 1
      %810 = vperm.xlu0 %809, %v243
      %v811 = vpop.permute.xlu0 %810
      %813 = vset.pattern.permute.xlu0 1
      %814 = vperm.xlu0 %813, %v244
      %v815 = vpop.permute.xlu0 %814
      %817 = vset.pattern.permute.xlu0 1
      %818 = vperm.xlu0 %817, %v245
      %v819 = vpop.permute.xlu0 %818
      %821 = vset.pattern.permute.xlu0 1
      %822 = vperm.xlu0 %821, %v246
      %v823 = vpop.permute.xlu0 %822
      %825 = vset.pattern.permute.xlu0 1
      %826 = vperm.xlu0 %825, %v247
      %v827 = vpop.permute.xlu0 %826
      %829 = vset.pattern.permute.xlu0 1
      %830 = vperm.xlu0 %829, %v248
      %v831 = vpop.permute.xlu0 %830
      %833 = vset.pattern.permute.xlu0 1
      %834 = vperm.xlu0 %833, %v249
      %v835 = vpop.permute.xlu0 %834
      %837 = vset.pattern.permute.xlu0 1
      %838 = vperm.xlu0 %837, %v250
      %v839 = vpop.permute.xlu0 %838
      %841 = vset.pattern.permute.xlu0 1
      %842 = vperm.xlu0 %841, %v251
      %v843 = vpop.permute.xlu0 %842
      %845 = vset.pattern.permute.xlu0 1
      %846 = vperm.xlu0 %845, %v252
      %v847 = vpop.permute.xlu0 %846
      %849 = vset.pattern.permute.xlu0 1
      %850 = vperm.xlu0 %849, %v253
      %v851 = vpop.permute.xlu0 %850
      %853 = vset.pattern.permute.xlu0 1
      %854 = vperm.xlu0 %853, %v254
      %v855 = vpop.permute.xlu0 %854
      %857 = vset.pattern.permute.xlu0 1
      %858 = vperm.xlu0 %857, %v255
      %v859 = vpop.permute.xlu0 %858
      %861 = vset.pattern.permute.xlu0 1
      %862 = vperm.xlu0 %861, %v256
      %v863 = vpop.permute.xlu0 %862
      %865 = vset.pattern.permute.xlu0 1
      %866 = vperm.xlu0 %865, %v257
      %v867 = vpop.permute.xlu0 %866
      %869 = vset.pattern.permute.xlu0 1
      %870 = vperm.xlu0 %869, %v258
      %v871 = vpop.permute.xlu0 %870
      %873 = vset.pattern.permute.xlu0 1
      %874 = vperm.xlu0 %873, %v259
      %v875 = vpop.permute.xlu0 %874
      %877 = vset.pattern.permute.xlu0 1
      %878 = vperm.xlu0 %877, %v260
      %v879 = vpop.permute.xlu0 %878
      %881 = vset.pattern.permute.xlu0 1
      %882 = vperm.xlu0 %881, %v261
      %v883 = vpop.permute.xlu0 %882
      %885 = vset.pattern.permute.xlu0 1
      %886 = vperm.xlu0 %885, %v262
      %v887 = vpop.permute.xlu0 %886
      %889 = vset.pattern.permute.xlu0 1
      %890 = vperm.xlu0 %889, %v263
      %v891 = vpop.permute.xlu0 %890
      %893 = vset.pattern.permute.xlu0 1
      %894 = vperm.xlu0 %893, %v264
      %v895 = vpop.permute.xlu0 %894
      %897 = vset.pattern.permute.xlu0 1
      %898 = vperm.xlu0 %897, %v265
      %v899 = vpop.permute.xlu0 %898
      %901 = vset.pattern.permute.xlu0 1
      %902 = vperm.xlu0 %901, %v266
      %v903 = vpop.permute.xlu0 %902
      %905 = vset.pattern.permute.xlu0 1
      %906 = vperm.xlu0 %905, %v267
      %v907 = vpop.permute.xlu0 %906
      %909 = vset.pattern.permute.xlu0 1
      %910 = vperm.xlu0 %909, %v268
      %v911 = vpop.permute.xlu0 %910
      %913 = vset.pattern.permute.xlu0 1
      %914 = vperm.xlu0 %913, %v269
      %v915 = vpop.permute.xlu0 %914
      %917 = vset.pattern.permute.xlu0 1
      %918 = vperm.xlu0 %917, %v270
      %v919 = vpop.permute.xlu0 %918
      %921 = vset.pattern.permute.xlu0 1
      %922 = vperm.xlu0 %921, %v271
      %v923 = vpop.permute.xlu0 %922
      %925 = vset.pattern.permute.xlu0 1
      %926 = vperm.xlu0 %925, %v272
      %v927 = vpop.permute.xlu0 %926
      %929 = vset.pattern.permute.xlu0 1
      %930 = vperm.xlu0 %929, %v273
      %v931 = vpop.permute.xlu0 %930
      %933 = vset.pattern.permute.xlu0 1
      %934 = vperm.xlu0 %933, %v274
      %v935 = vpop.permute.xlu0 %934
      %937 = vset.pattern.permute.xlu0 1
      %938 = vperm.xlu0 %937, %v275
      %v939 = vpop.permute.xlu0 %938
      %941 = vset.pattern.permute.xlu0 1
      %942 = vperm.xlu0 %941, %v276
      %v943 = vpop.permute.xlu0 %942
      %945 = vset.pattern.permute.xlu0 1
      %946 = vperm.xlu0 %945, %v277
      %v947 = vpop.permute.xlu0 %946
      %949 = vset.pattern.permute.xlu0 1
      %950 = vperm.xlu0 %949, %v278
      %v951 = vpop.permute.xlu0 %950
      %953 = vset.pattern.permute.xlu0 1
      %954 = vperm.xlu0 %953, %v279
      %v955 = vpop.permute.xlu0 %954
      %957 = vset.pattern.permute.xlu0 1
      %958 = vperm.xlu0 %957, %v280
      %v959 = vpop.permute.xlu0 %958
      %961 = vset.pattern.permute.xlu0 1
      %962 = vperm.xlu0 %961, %v281
      %v963 = vpop.permute.xlu0 %962
      %965 = vset.pattern.permute.xlu0 1
      %966 = vperm.xlu0 %965, %v282
      %v967 = vpop.permute.xlu0 %966
      %969 = vset.pattern.permute.xlu0 1
      %970 = vperm.xlu0 %969, %v283
      %v971 = vpop.permute.xlu0 %970
      %973 = vset.pattern.permute.xlu0 1
      %974 = vperm.xlu0 %973, %v284
      %v975 = vpop.permute.xlu0 %974
      %977 = vset.pattern.permute.xlu0 1
      %978 = vperm.xlu0 %977, %v285
      %v979 = vpop.permute.xlu0 %978
      %981 = vset.pattern.permute.xlu0 1
      %982 = vperm.xlu0 %981, %v286
      %v983 = vpop.permute.xlu0 %982
      %985 = vset.pattern.permute.xlu0 1
      %986 = vperm.xlu0 %985, %v287
      %v987 = vpop.permute.xlu0 %986
      %989 = vset.pattern.permute.xlu0 1
      %990 = vperm.xlu0 %989, %v288
      %v991 = vpop.permute.xlu0 %990
      %993 = vset.pattern.permute.xlu0 1
      %994 = vperm.xlu0 %993, %v289
      %v995 = vpop.permute.xlu0 %994
      %997 = vset.pattern.permute.xlu0 1
      %998 = vperm.xlu0 %997, %v290
      %v999 = vpop.permute.xlu0 %998
      %1001 = vset.pattern.permute.xlu0 1
      %1002 = vperm.xlu0 %1001, %v291
      %v1003 = vpop.permute.xlu0 %1002
      %1005 = vset.pattern.permute.xlu0 1
      %1006 = vperm.xlu0 %1005, %v292
      %v1007 = vpop.permute.xlu0 %1006
      %v1009 = vlaneseq
      %v1010 = vshrl.u32 %v1009, 7
      %v1011 = vsub.s32 1, %v1010
      %v1012 = vrot.slane %v293, %v1011
      %v1013 = vmul.f32 %v755, %v1012
      %v1014 = vmul.f32 %v759, %v1012
      %v1015 = vmul.f32 %v763, %v1012
      %v1016 = vmul.f32 %v767, %v1012
      %v1017 = vmul.f32 %v771, %v1012
      %v1018 = vmul.f32 %v775, %v1012
      %v1019 = vmul.f32 %v779, %v1012
      %v1020 = vmul.f32 %v783, %v1012
      %v1021 = vmul.f32 %v787, %v1012
      %v1022 = vmul.f32 %v791, %v1012
      %v1023 = vmul.f32 %v795, %v1012
      %v1024 = vmul.f32 %v799, %v1012
      %v1025 = vmul.f32 %v803, %v1012
      %v1026 = vmul.f32 %v807, %v1012
      %v1027 = vmul.f32 %v811, %v1012
      %v1028 = vmul.f32 %v815, %v1012
      %v1029 = vmul.f32 %v819, %v1012
      %v1030 = vmul.f32 %v823, %v1012
      %v1031 = vmul.f32 %v827, %v1012
      %v1032 = vmul.f32 %v831, %v1012
      %v1033 = vmul.f32 %v835, %v1012
      %v1034 = vmul.f32 %v839, %v1012
      %v1035 = vmul.f32 %v843, %v1012
      %v1036 = vmul.f32 %v847, %v1012
      %v1037 = vmul.f32 %v851, %v1012
      %v1038 = vmul.f32 %v855, %v1012
      %v1039 = vmul.f32 %v859, %v1012
      %v1040 = vmul.f32 %v863, %v1012
      %v1041 = vmul.f32 %v867, %v1012
      %v1042 = vmul.f32 %v871, %v1012
      %v1043 = vmul.f32 %v875, %v1012
      %v1044 = vmul.f32 %v879, %v1012
      %v1045 = vmul.f32 %v883, %v1012
      %v1046 = vmul.f32 %v887, %v1012
      %v1047 = vmul.f32 %v891, %v1012
      %v1048 = vmul.f32 %v895, %v1012
      %v1049 = vmul.f32 %v899, %v1012
      %v1050 = vmul.f32 %v903, %v1012
      %v1051 = vmul.f32 %v907, %v1012
      %v1052 = vmul.f32 %v911, %v1012
      %v1053 = vmul.f32 %v915, %v1012
      %v1054 = vmul.f32 %v919, %v1012
      %v1055 = vmul.f32 %v923, %v1012
      %v1056 = vmul.f32 %v927, %v1012
      %v1057 = vmul.f32 %v931, %v1012
      %v1058 = vmul.f32 %v935, %v1012
      %v1059 = vmul.f32 %v939, %v1012
      %v1060 = vmul.f32 %v943, %v1012
      %v1061 = vmul.f32 %v947, %v1012
      %v1062 = vmul.f32 %v951, %v1012
      %v1063 = vmul.f32 %v955, %v1012
      %v1064 = vmul.f32 %v959, %v1012
      %v1065 = vmul.f32 %v963, %v1012
      %v1066 = vmul.f32 %v967, %v1012
      %v1067 = vmul.f32 %v971, %v1012
      %v1068 = vmul.f32 %v975, %v1012
      %v1069 = vmul.f32 %v979, %v1012
      %v1070 = vmul.f32 %v983, %v1012
      %v1071 = vmul.f32 %v987, %v1012
      %v1072 = vmul.f32 %v991, %v1012
      %v1073 = vmul.f32 %v995, %v1012
      %v1074 = vmul.f32 %v999, %v1012
      %v1075 = vmul.f32 %v1003, %v1012
      %v1076 = vmul.f32 %v1007, %v1012
      %v1077 = vadd.f32 %v689, %v1013
      %v1078 = vadd.f32 %v690, %v1014
      %v1079 = vadd.f32 %v691, %v1015
      %v1080 = vadd.f32 %v692, %v1016
      %v1081 = vadd.f32 %v693, %v1017
      %v1082 = vadd.f32 %v694, %v1018
      %v1083 = vadd.f32 %v695, %v1019
      %v1084 = vadd.f32 %v696, %v1020
      %v1085 = vadd.f32 %v697, %v1021
      %v1086 = vadd.f32 %v698, %v1022
      %v1087 = vadd.f32 %v699, %v1023
      %v1088 = vadd.f32 %v700, %v1024
      %v1089 = vadd.f32 %v701, %v1025
      %v1090 = vadd.f32 %v702, %v1026
      %v1091 = vadd.f32 %v703, %v1027
      %v1092 = vadd.f32 %v704, %v1028
      %v1093 = vadd.f32 %v705, %v1029
      %v1094 = vadd.f32 %v706, %v1030
      %v1095 = vadd.f32 %v707, %v1031
      %v1096 = vadd.f32 %v708, %v1032
      %v1097 = vadd.f32 %v709, %v1033
      %v1098 = vadd.f32 %v710, %v1034
      %v1099 = vadd.f32 %v711, %v1035
      %v1100 = vadd.f32 %v712, %v1036
      %v1101 = vadd.f32 %v713, %v1037
      %v1102 = vadd.f32 %v714, %v1038
      %v1103 = vadd.f32 %v715, %v1039
      %v1104 = vadd.f32 %v716, %v1040
      %v1105 = vadd.f32 %v717, %v1041
      %v1106 = vadd.f32 %v718, %v1042
      %v1107 = vadd.f32 %v719, %v1043
      %v1108 = vadd.f32 %v720, %v1044
      %v1109 = vadd.f32 %v721, %v1045
      %v1110 = vadd.f32 %v722, %v1046
      %v1111 = vadd.f32 %v723, %v1047
      %v1112 = vadd.f32 %v724, %v1048
      %v1113 = vadd.f32 %v725, %v1049
      %v1114 = vadd.f32 %v726, %v1050
      %v1115 = vadd.f32 %v727, %v1051
      %v1116 = vadd.f32 %v728, %v1052
      %v1117 = vadd.f32 %v729, %v1053
      %v1118 = vadd.f32 %v730, %v1054
      %v1119 = vadd.f32 %v731, %v1055
      %v1120 = vadd.f32 %v732, %v1056
      %v1121 = vadd.f32 %v733, %v1057
      %v1122 = vadd.f32 %v734, %v1058
      %v1123 = vadd.f32 %v735, %v1059
      %v1124 = vadd.f32 %v736, %v1060
      %v1125 = vadd.f32 %v737, %v1061
      %v1126 = vadd.f32 %v738, %v1062
      %v1127 = vadd.f32 %v739, %v1063
      %v1128 = vadd.f32 %v740, %v1064
      %v1129 = vadd.f32 %v741, %v1065
      %v1130 = vadd.f32 %v742, %v1066
      %v1131 = vadd.f32 %v743, %v1067
      %v1132 = vadd.f32 %v744, %v1068
      %v1133 = vadd.f32 %v745, %v1069
      %v1134 = vadd.f32 %v746, %v1070
      %v1135 = vadd.f32 %v747, %v1071
      %v1136 = vadd.f32 %v748, %v1072
      %v1137 = vadd.f32 %v749, %v1073
      %v1138 = vadd.f32 %v750, %v1074
      %v1139 = vadd.f32 %v751, %v1075
      %v1140 = vadd.f32 %v752, %v1076
      %1141 = vset.pattern.permute.xlu0 2
      %1142 = vperm.xlu0 %1141, %v229
      %v1143 = vpop.permute.xlu0 %1142
      %1145 = vset.pattern.permute.xlu0 2
      %1146 = vperm.xlu0 %1145, %v230
      %v1147 = vpop.permute.xlu0 %1146
      %1149 = vset.pattern.permute.xlu0 2
      %1150 = vperm.xlu0 %1149, %v231
      %v1151 = vpop.permute.xlu0 %1150
      %1153 = vset.pattern.permute.xlu0 2
      %1154 = vperm.xlu0 %1153, %v232
      %v1155 = vpop.permute.xlu0 %1154
      %1157 = vset.pattern.permute.xlu0 2
      %1158 = vperm.xlu0 %1157, %v233
      %v1159 = vpop.permute.xlu0 %1158
      %1161 = vset.pattern.permute.xlu0 2
      %1162 = vperm.xlu0 %1161, %v234
      %v1163 = vpop.permute.xlu0 %1162
      %1165 = vset.pattern.permute.xlu0 2
      %1166 = vperm.xlu0 %1165, %v235
      %v1167 = vpop.permute.xlu0 %1166
      %1169 = vset.pattern.permute.xlu0 2
      %1170 = vperm.xlu0 %1169, %v236
      %v1171 = vpop.permute.xlu0 %1170
      %1173 = vset.pattern.permute.xlu0 2
      %1174 = vperm.xlu0 %1173, %v237
      %v1175 = vpop.permute.xlu0 %1174
      %1177 = vset.pattern.permute.xlu0 2
      %1178 = vperm.xlu0 %1177, %v238
      %v1179 = vpop.permute.xlu0 %1178
      %1181 = vset.pattern.permute.xlu0 2
      %1182 = vperm.xlu0 %1181, %v239
      %v1183 = vpop.permute.xlu0 %1182
      %1185 = vset.pattern.permute.xlu0 2
      %1186 = vperm.xlu0 %1185, %v240
      %v1187 = vpop.permute.xlu0 %1186
      %1189 = vset.pattern.permute.xlu0 2
      %1190 = vperm.xlu0 %1189, %v241
      %v1191 = vpop.permute.xlu0 %1190
      %1193 = vset.pattern.permute.xlu0 2
      %1194 = vperm.xlu0 %1193, %v242
      %v1195 = vpop.permute.xlu0 %1194
      %1197 = vset.pattern.permute.xlu0 2
      %1198 = vperm.xlu0 %1197, %v243
      %v1199 = vpop.permute.xlu0 %1198
      %1201 = vset.pattern.permute.xlu0 2
      %1202 = vperm.xlu0 %1201, %v244
      %v1203 = vpop.permute.xlu0 %1202
      %1205 = vset.pattern.permute.xlu0 2
      %1206 = vperm.xlu0 %1205, %v245
      %v1207 = vpop.permute.xlu0 %1206
      %1209 = vset.pattern.permute.xlu0 2
      %1210 = vperm.xlu0 %1209, %v246
      %v1211 = vpop.permute.xlu0 %1210
      %1213 = vset.pattern.permute.xlu0 2
      %1214 = vperm.xlu0 %1213, %v247
      %v1215 = vpop.permute.xlu0 %1214
      %1217 = vset.pattern.permute.xlu0 2
      %1218 = vperm.xlu0 %1217, %v248
      %v1219 = vpop.permute.xlu0 %1218
      %1221 = vset.pattern.permute.xlu0 2
      %1222 = vperm.xlu0 %1221, %v249
      %v1223 = vpop.permute.xlu0 %1222
      %1225 = vset.pattern.permute.xlu0 2
      %1226 = vperm.xlu0 %1225, %v250
      %v1227 = vpop.permute.xlu0 %1226
      %1229 = vset.pattern.permute.xlu0 2
      %1230 = vperm.xlu0 %1229, %v251
      %v1231 = vpop.permute.xlu0 %1230
      %1233 = vset.pattern.permute.xlu0 2
      %1234 = vperm.xlu0 %1233, %v252
      %v1235 = vpop.permute.xlu0 %1234
      %1237 = vset.pattern.permute.xlu0 2
      %1238 = vperm.xlu0 %1237, %v253
      %v1239 = vpop.permute.xlu0 %1238
      %1241 = vset.pattern.permute.xlu0 2
      %1242 = vperm.xlu0 %1241, %v254
      %v1243 = vpop.permute.xlu0 %1242
      %1245 = vset.pattern.permute.xlu0 2
      %1246 = vperm.xlu0 %1245, %v255
      %v1247 = vpop.permute.xlu0 %1246
      %1249 = vset.pattern.permute.xlu0 2
      %1250 = vperm.xlu0 %1249, %v256
      %v1251 = vpop.permute.xlu0 %1250
      %1253 = vset.pattern.permute.xlu0 2
      %1254 = vperm.xlu0 %1253, %v257
      %v1255 = vpop.permute.xlu0 %1254
      %1257 = vset.pattern.permute.xlu0 2
      %1258 = vperm.xlu0 %1257, %v258
      %v1259 = vpop.permute.xlu0 %1258
      %1261 = vset.pattern.permute.xlu0 2
      %1262 = vperm.xlu0 %1261, %v259
      %v1263 = vpop.permute.xlu0 %1262
      %1265 = vset.pattern.permute.xlu0 2
      %1266 = vperm.xlu0 %1265, %v260
      %v1267 = vpop.permute.xlu0 %1266
      %1269 = vset.pattern.permute.xlu0 2
      %1270 = vperm.xlu0 %1269, %v261
      %v1271 = vpop.permute.xlu0 %1270
      %1273 = vset.pattern.permute.xlu0 2
      %1274 = vperm.xlu0 %1273, %v262
      %v1275 = vpop.permute.xlu0 %1274
      %1277 = vset.pattern.permute.xlu0 2
      %1278 = vperm.xlu0 %1277, %v263
      %v1279 = vpop.permute.xlu0 %1278
      %1281 = vset.pattern.permute.xlu0 2
      %1282 = vperm.xlu0 %1281, %v264
      %v1283 = vpop.permute.xlu0 %1282
      %1285 = vset.pattern.permute.xlu0 2
      %1286 = vperm.xlu0 %1285, %v265
      %v1287 = vpop.permute.xlu0 %1286
      %1289 = vset.pattern.permute.xlu0 2
      %1290 = vperm.xlu0 %1289, %v266
      %v1291 = vpop.permute.xlu0 %1290
      %1293 = vset.pattern.permute.xlu0 2
      %1294 = vperm.xlu0 %1293, %v267
      %v1295 = vpop.permute.xlu0 %1294
      %1297 = vset.pattern.permute.xlu0 2
      %1298 = vperm.xlu0 %1297, %v268
      %v1299 = vpop.permute.xlu0 %1298
      %1301 = vset.pattern.permute.xlu0 2
      %1302 = vperm.xlu0 %1301, %v269
      %v1303 = vpop.permute.xlu0 %1302
      %1305 = vset.pattern.permute.xlu0 2
      %1306 = vperm.xlu0 %1305, %v270
      %v1307 = vpop.permute.xlu0 %1306
      %1309 = vset.pattern.permute.xlu0 2
      %1310 = vperm.xlu0 %1309, %v271
      %v1311 = vpop.permute.xlu0 %1310
      %1313 = vset.pattern.permute.xlu0 2
      %1314 = vperm.xlu0 %1313, %v272
      %v1315 = vpop.permute.xlu0 %1314
      %1317 = vset.pattern.permute.xlu0 2
      %1318 = vperm.xlu0 %1317, %v273
      %v1319 = vpop.permute.xlu0 %1318
      %1321 = vset.pattern.permute.xlu0 2
      %1322 = vperm.xlu0 %1321, %v274
      %v1323 = vpop.permute.xlu0 %1322
      %1325 = vset.pattern.permute.xlu0 2
      %1326 = vperm.xlu0 %1325, %v275
      %v1327 = vpop.permute.xlu0 %1326
      %1329 = vset.pattern.permute.xlu0 2
      %1330 = vperm.xlu0 %1329, %v276
      %v1331 = vpop.permute.xlu0 %1330
      %1333 = vset.pattern.permute.xlu0 2
      %1334 = vperm.xlu0 %1333, %v277
      %v1335 = vpop.permute.xlu0 %1334
      %1337 = vset.pattern.permute.xlu0 2
      %1338 = vperm.xlu0 %1337, %v278
      %v1339 = vpop.permute.xlu0 %1338
      %1341 = vset.pattern.permute.xlu0 2
      %1342 = vperm.xlu0 %1341, %v279
      %v1343 = vpop.permute.xlu0 %1342
      %1345 = vset.pattern.permute.xlu0 2
      %1346 = vperm.xlu0 %1345, %v280
      %v1347 = vpop.permute.xlu0 %1346
      %1349 = vset.pattern.permute.xlu0 2
      %1350 = vperm.xlu0 %1349, %v281
      %v1351 = vpop.permute.xlu0 %1350
      %1353 = vset.pattern.permute.xlu0 2
      %1354 = vperm.xlu0 %1353, %v282
      %v1355 = vpop.permute.xlu0 %1354
      %1357 = vset.pattern.permute.xlu0 2
      %1358 = vperm.xlu0 %1357, %v283
      %v1359 = vpop.permute.xlu0 %1358
      %1361 = vset.pattern.permute.xlu0 2
      %1362 = vperm.xlu0 %1361, %v284
      %v1363 = vpop.permute.xlu0 %1362
      %1365 = vset.pattern.permute.xlu0 2
      %1366 = vperm.xlu0 %1365, %v285
      %v1367 = vpop.permute.xlu0 %1366
      %1369 = vset.pattern.permute.xlu0 2
      %1370 = vperm.xlu0 %1369, %v286
      %v1371 = vpop.permute.xlu0 %1370
      %1373 = vset.pattern.permute.xlu0 2
      %1374 = vperm.xlu0 %1373, %v287
      %v1375 = vpop.permute.xlu0 %1374
      %1377 = vset.pattern.permute.xlu0 2
      %1378 = vperm.xlu0 %1377, %v288
      %v1379 = vpop.permute.xlu0 %1378
      %1381 = vset.pattern.permute.xlu0 2
      %1382 = vperm.xlu0 %1381, %v289
      %v1383 = vpop.permute.xlu0 %1382
      %1385 = vset.pattern.permute.xlu0 2
      %1386 = vperm.xlu0 %1385, %v290
      %v1387 = vpop.permute.xlu0 %1386
      %1389 = vset.pattern.permute.xlu0 2
      %1390 = vperm.xlu0 %1389, %v291
      %v1391 = vpop.permute.xlu0 %1390
      %1393 = vset.pattern.permute.xlu0 2
      %1394 = vperm.xlu0 %1393, %v292
      %v1395 = vpop.permute.xlu0 %1394
      %v1397 = vlaneseq
      %v1398 = vshrl.u32 %v1397, 7
      %v1399 = vsub.s32 2, %v1398
      %v1400 = vrot.slane %v293, %v1399
      %v1401 = vmul.f32 %v1143, %v1400
      %v1402 = vmul.f32 %v1147, %v1400
      %v1403 = vmul.f32 %v1151, %v1400
      %v1404 = vmul.f32 %v1155, %v1400
      %v1405 = vmul.f32 %v1159, %v1400
      %v1406 = vmul.f32 %v1163, %v1400
      %v1407 = vmul.f32 %v1167, %v1400
      %v1408 = vmul.f32 %v1171, %v1400
      %v1409 = vmul.f32 %v1175, %v1400
      %v1410 = vmul.f32 %v1179, %v1400
      %v1411 = vmul.f32 %v1183, %v1400
      %v1412 = vmul.f32 %v1187, %v1400
      %v1413 = vmul.f32 %v1191, %v1400
      %v1414 = vmul.f32 %v1195, %v1400
      %v1415 = vmul.f32 %v1199, %v1400
      %v1416 = vmul.f32 %v1203, %v1400
      %v1417 = vmul.f32 %v1207, %v1400
      %v1418 = vmul.f32 %v1211, %v1400
      %v1419 = vmul.f32 %v1215, %v1400
      %v1420 = vmul.f32 %v1219, %v1400
      %v1421 = vmul.f32 %v1223, %v1400
      %v1422 = vmul.f32 %v1227, %v1400
      %v1423 = vmul.f32 %v1231, %v1400
      %v1424 = vmul.f32 %v1235, %v1400
      %v1425 = vmul.f32 %v1239, %v1400
      %v1426 = vmul.f32 %v1243, %v1400
      %v1427 = vmul.f32 %v1247, %v1400
      %v1428 = vmul.f32 %v1251, %v1400
      %v1429 = vmul.f32 %v1255, %v1400
      %v1430 = vmul.f32 %v1259, %v1400
      %v1431 = vmul.f32 %v1263, %v1400
      %v1432 = vmul.f32 %v1267, %v1400
      %v1433 = vmul.f32 %v1271, %v1400
      %v1434 = vmul.f32 %v1275, %v1400
      %v1435 = vmul.f32 %v1279, %v1400
      %v1436 = vmul.f32 %v1283, %v1400
      %v1437 = vmul.f32 %v1287, %v1400
      %v1438 = vmul.f32 %v1291, %v1400
      %v1439 = vmul.f32 %v1295, %v1400
      %v1440 = vmul.f32 %v1299, %v1400
      %v1441 = vmul.f32 %v1303, %v1400
      %v1442 = vmul.f32 %v1307, %v1400
      %v1443 = vmul.f32 %v1311, %v1400
      %v1444 = vmul.f32 %v1315, %v1400
      %v1445 = vmul.f32 %v1319, %v1400
      %v1446 = vmul.f32 %v1323, %v1400
      %v1447 = vmul.f32 %v1327, %v1400
      %v1448 = vmul.f32 %v1331, %v1400
      %v1449 = vmul.f32 %v1335, %v1400
      %v1450 = vmul.f32 %v1339, %v1400
      %v1451 = vmul.f32 %v1343, %v1400
      %v1452 = vmul.f32 %v1347, %v1400
      %v1453 = vmul.f32 %v1351, %v1400
      %v1454 = vmul.f32 %v1355, %v1400
      %v1455 = vmul.f32 %v1359, %v1400
      %v1456 = vmul.f32 %v1363, %v1400
      %v1457 = vmul.f32 %v1367, %v1400
      %v1458 = vmul.f32 %v1371, %v1400
      %v1459 = vmul.f32 %v1375, %v1400
      %v1460 = vmul.f32 %v1379, %v1400
      %v1461 = vmul.f32 %v1383, %v1400
      %v1462 = vmul.f32 %v1387, %v1400
      %v1463 = vmul.f32 %v1391, %v1400
      %v1464 = vmul.f32 %v1395, %v1400
      %v1465 = vadd.f32 %v1077, %v1401
      %v1466 = vadd.f32 %v1078, %v1402
      %v1467 = vadd.f32 %v1079, %v1403
      %v1468 = vadd.f32 %v1080, %v1404
      %v1469 = vadd.f32 %v1081, %v1405
      %v1470 = vadd.f32 %v1082, %v1406
      %v1471 = vadd.f32 %v1083, %v1407
      %v1472 = vadd.f32 %v1084, %v1408
      %v1473 = vadd.f32 %v1085, %v1409
      %v1474 = vadd.f32 %v1086, %v1410
      %v1475 = vadd.f32 %v1087, %v1411
      %v1476 = vadd.f32 %v1088, %v1412
      %v1477 = vadd.f32 %v1089, %v1413
      %v1478 = vadd.f32 %v1090, %v1414
      %v1479 = vadd.f32 %v1091, %v1415
      %v1480 = vadd.f32 %v1092, %v1416
      %v1481 = vadd.f32 %v1093, %v1417
      %v1482 = vadd.f32 %v1094, %v1418
      %v1483 = vadd.f32 %v1095, %v1419
      %v1484 = vadd.f32 %v1096, %v1420
      %v1485 = vadd.f32 %v1097, %v1421
      %v1486 = vadd.f32 %v1098, %v1422
      %v1487 = vadd.f32 %v1099, %v1423
      %v1488 = vadd.f32 %v1100, %v1424
      %v1489 = vadd.f32 %v1101, %v1425
      %v1490 = vadd.f32 %v1102, %v1426
      %v1491 = vadd.f32 %v1103, %v1427
      %v1492 = vadd.f32 %v1104, %v1428
      %v1493 = vadd.f32 %v1105, %v1429
      %v1494 = vadd.f32 %v1106, %v1430
      %v1495 = vadd.f32 %v1107, %v1431
      %v1496 = vadd.f32 %v1108, %v1432
      %v1497 = vadd.f32 %v1109, %v1433
      %v1498 = vadd.f32 %v1110, %v1434
      %v1499 = vadd.f32 %v1111, %v1435
      %v1500 = vadd.f32 %v1112, %v1436
      %v1501 = vadd.f32 %v1113, %v1437
      %v1502 = vadd.f32 %v1114, %v1438
      %v1503 = vadd.f32 %v1115, %v1439
      %v1504 = vadd.f32 %v1116, %v1440
      %v1505 = vadd.f32 %v1117, %v1441
      %v1506 = vadd.f32 %v1118, %v1442
      %v1507 = vadd.f32 %v1119, %v1443
      %v1508 = vadd.f32 %v1120, %v1444
      %v1509 = vadd.f32 %v1121, %v1445
      %v1510 = vadd.f32 %v1122, %v1446
      %v1511 = vadd.f32 %v1123, %v1447
      %v1512 = vadd.f32 %v1124, %v1448
      %v1513 = vadd.f32 %v1125, %v1449
      %v1514 = vadd.f32 %v1126, %v1450
      %v1515 = vadd.f32 %v1127, %v1451
      %v1516 = vadd.f32 %v1128, %v1452
      %v1517 = vadd.f32 %v1129, %v1453
      %v1518 = vadd.f32 %v1130, %v1454
      %v1519 = vadd.f32 %v1131, %v1455
      %v1520 = vadd.f32 %v1132, %v1456
      %v1521 = vadd.f32 %v1133, %v1457
      %v1522 = vadd.f32 %v1134, %v1458
      %v1523 = vadd.f32 %v1135, %v1459
      %v1524 = vadd.f32 %v1136, %v1460
      %v1525 = vadd.f32 %v1137, %v1461
      %v1526 = vadd.f32 %v1138, %v1462
      %v1527 = vadd.f32 %v1139, %v1463
      %v1528 = vadd.f32 %v1140, %v1464
      %1529 = vset.pattern.permute.xlu0 3
      %1530 = vperm.xlu0 %1529, %v229
      %v1531 = vpop.permute.xlu0 %1530
      %1533 = vset.pattern.permute.xlu0 3
      %1534 = vperm.xlu0 %1533, %v230
      %v1535 = vpop.permute.xlu0 %1534
      %1537 = vset.pattern.permute.xlu0 3
      %1538 = vperm.xlu0 %1537, %v231
      %v1539 = vpop.permute.xlu0 %1538
      %1541 = vset.pattern.permute.xlu0 3
      %1542 = vperm.xlu0 %1541, %v232
      %v1543 = vpop.permute.xlu0 %1542
      %1545 = vset.pattern.permute.xlu0 3
      %1546 = vperm.xlu0 %1545, %v233
      %v1547 = vpop.permute.xlu0 %1546
      %1549 = vset.pattern.permute.xlu0 3
      %1550 = vperm.xlu0 %1549, %v234
      %v1551 = vpop.permute.xlu0 %1550
      %1553 = vset.pattern.permute.xlu0 3
      %1554 = vperm.xlu0 %1553, %v235
      %v1555 = vpop.permute.xlu0 %1554
      %1557 = vset.pattern.permute.xlu0 3
      %1558 = vperm.xlu0 %1557, %v236
      %v1559 = vpop.permute.xlu0 %1558
      %1561 = vset.pattern.permute.xlu0 3
      %1562 = vperm.xlu0 %1561, %v237
      %v1563 = vpop.permute.xlu0 %1562
      %1565 = vset.pattern.permute.xlu0 3
      %1566 = vperm.xlu0 %1565, %v238
      %v1567 = vpop.permute.xlu0 %1566
      %1569 = vset.pattern.permute.xlu0 3
      %1570 = vperm.xlu0 %1569, %v239
      %v1571 = vpop.permute.xlu0 %1570
      %1573 = vset.pattern.permute.xlu0 3
      %1574 = vperm.xlu0 %1573, %v240
      %v1575 = vpop.permute.xlu0 %1574
      %1577 = vset.pattern.permute.xlu0 3
      %1578 = vperm.xlu0 %1577, %v241
      %v1579 = vpop.permute.xlu0 %1578
      %1581 = vset.pattern.permute.xlu0 3
      %1582 = vperm.xlu0 %1581, %v242
      %v1583 = vpop.permute.xlu0 %1582
      %1585 = vset.pattern.permute.xlu0 3
      %1586 = vperm.xlu0 %1585, %v243
      %v1587 = vpop.permute.xlu0 %1586
      %1589 = vset.pattern.permute.xlu0 3
      %1590 = vperm.xlu0 %1589, %v244
      %v1591 = vpop.permute.xlu0 %1590
      %1593 = vset.pattern.permute.xlu0 3
      %1594 = vperm.xlu0 %1593, %v245
      %v1595 = vpop.permute.xlu0 %1594
      %1597 = vset.pattern.permute.xlu0 3
      %1598 = vperm.xlu0 %1597, %v246
      %v1599 = vpop.permute.xlu0 %1598
      %1601 = vset.pattern.permute.xlu0 3
      %1602 = vperm.xlu0 %1601, %v247
      %v1603 = vpop.permute.xlu0 %1602
      %1605 = vset.pattern.permute.xlu0 3
      %1606 = vperm.xlu0 %1605, %v248
      %v1607 = vpop.permute.xlu0 %1606
      %1609 = vset.pattern.permute.xlu0 3
      %1610 = vperm.xlu0 %1609, %v249
      %v1611 = vpop.permute.xlu0 %1610
      %1613 = vset.pattern.permute.xlu0 3
      %1614 = vperm.xlu0 %1613, %v250
      %v1615 = vpop.permute.xlu0 %1614
      %1617 = vset.pattern.permute.xlu0 3
      %1618 = vperm.xlu0 %1617, %v251
      %v1619 = vpop.permute.xlu0 %1618
      %1621 = vset.pattern.permute.xlu0 3
      %1622 = vperm.xlu0 %1621, %v252
      %v1623 = vpop.permute.xlu0 %1622
      %1625 = vset.pattern.permute.xlu0 3
      %1626 = vperm.xlu0 %1625, %v253
      %v1627 = vpop.permute.xlu0 %1626
      %1629 = vset.pattern.permute.xlu0 3
      %1630 = vperm.xlu0 %1629, %v254
      %v1631 = vpop.permute.xlu0 %1630
      %1633 = vset.pattern.permute.xlu0 3
      %1634 = vperm.xlu0 %1633, %v255
      %v1635 = vpop.permute.xlu0 %1634
      %1637 = vset.pattern.permute.xlu0 3
      %1638 = vperm.xlu0 %1637, %v256
      %v1639 = vpop.permute.xlu0 %1638
      %1641 = vset.pattern.permute.xlu0 3
      %1642 = vperm.xlu0 %1641, %v257
      %v1643 = vpop.permute.xlu0 %1642
      %1645 = vset.pattern.permute.xlu0 3
      %1646 = vperm.xlu0 %1645, %v258
      %v1647 = vpop.permute.xlu0 %1646
      %1649 = vset.pattern.permute.xlu0 3
      %1650 = vperm.xlu0 %1649, %v259
      %v1651 = vpop.permute.xlu0 %1650
      %1653 = vset.pattern.permute.xlu0 3
      %1654 = vperm.xlu0 %1653, %v260
      %v1655 = vpop.permute.xlu0 %1654
      %1657 = vset.pattern.permute.xlu0 3
      %1658 = vperm.xlu0 %1657, %v261
      %v1659 = vpop.permute.xlu0 %1658
      %1661 = vset.pattern.permute.xlu0 3
      %1662 = vperm.xlu0 %1661, %v262
      %v1663 = vpop.permute.xlu0 %1662
      %1665 = vset.pattern.permute.xlu0 3
      %1666 = vperm.xlu0 %1665, %v263
      %v1667 = vpop.permute.xlu0 %1666
      %1669 = vset.pattern.permute.xlu0 3
      %1670 = vperm.xlu0 %1669, %v264
      %v1671 = vpop.permute.xlu0 %1670
      %1673 = vset.pattern.permute.xlu0 3
      %1674 = vperm.xlu0 %1673, %v265
      %v1675 = vpop.permute.xlu0 %1674
      %1677 = vset.pattern.permute.xlu0 3
      %1678 = vperm.xlu0 %1677, %v266
      %v1679 = vpop.permute.xlu0 %1678
      %1681 = vset.pattern.permute.xlu0 3
      %1682 = vperm.xlu0 %1681, %v267
      %v1683 = vpop.permute.xlu0 %1682
      %1685 = vset.pattern.permute.xlu0 3
      %1686 = vperm.xlu0 %1685, %v268
      %v1687 = vpop.permute.xlu0 %1686
      %1689 = vset.pattern.permute.xlu0 3
      %1690 = vperm.xlu0 %1689, %v269
      %v1691 = vpop.permute.xlu0 %1690
      %1693 = vset.pattern.permute.xlu0 3
      %1694 = vperm.xlu0 %1693, %v270
      %v1695 = vpop.permute.xlu0 %1694
      %1697 = vset.pattern.permute.xlu0 3
      %1698 = vperm.xlu0 %1697, %v271
      %v1699 = vpop.permute.xlu0 %1698
      %1701 = vset.pattern.permute.xlu0 3
      %1702 = vperm.xlu0 %1701, %v272
      %v1703 = vpop.permute.xlu0 %1702
      %1705 = vset.pattern.permute.xlu0 3
      %1706 = vperm.xlu0 %1705, %v273
      %v1707 = vpop.permute.xlu0 %1706
      %1709 = vset.pattern.permute.xlu0 3
      %1710 = vperm.xlu0 %1709, %v274
      %v1711 = vpop.permute.xlu0 %1710
      %1713 = vset.pattern.permute.xlu0 3
      %1714 = vperm.xlu0 %1713, %v275
      %v1715 = vpop.permute.xlu0 %1714
      %1717 = vset.pattern.permute.xlu0 3
      %1718 = vperm.xlu0 %1717, %v276
      %v1719 = vpop.permute.xlu0 %1718
      %1721 = vset.pattern.permute.xlu0 3
      %1722 = vperm.xlu0 %1721, %v277
      %v1723 = vpop.permute.xlu0 %1722
      %1725 = vset.pattern.permute.xlu0 3
      %1726 = vperm.xlu0 %1725, %v278
      %v1727 = vpop.permute.xlu0 %1726
      %1729 = vset.pattern.permute.xlu0 3
      %1730 = vperm.xlu0 %1729, %v279
      %v1731 = vpop.permute.xlu0 %1730
      %1733 = vset.pattern.permute.xlu0 3
      %1734 = vperm.xlu0 %1733, %v280
      %v1735 = vpop.permute.xlu0 %1734
      %1737 = vset.pattern.permute.xlu0 3
      %1738 = vperm.xlu0 %1737, %v281
      %v1739 = vpop.permute.xlu0 %1738
      %1741 = vset.pattern.permute.xlu0 3
      %1742 = vperm.xlu0 %1741, %v282
      %v1743 = vpop.permute.xlu0 %1742
      %1745 = vset.pattern.permute.xlu0 3
      %1746 = vperm.xlu0 %1745, %v283
      %v1747 = vpop.permute.xlu0 %1746
      %1749 = vset.pattern.permute.xlu0 3
      %1750 = vperm.xlu0 %1749, %v284
      %v1751 = vpop.permute.xlu0 %1750
      %1753 = vset.pattern.permute.xlu0 3
      %1754 = vperm.xlu0 %1753, %v285
      %v1755 = vpop.permute.xlu0 %1754
      %1757 = vset.pattern.permute.xlu0 3
      %1758 = vperm.xlu0 %1757, %v286
      %v1759 = vpop.permute.xlu0 %1758
      %1761 = vset.pattern.permute.xlu0 3
      %1762 = vperm.xlu0 %1761, %v287
      %v1763 = vpop.permute.xlu0 %1762
      %1765 = vset.pattern.permute.xlu0 3
      %1766 = vperm.xlu0 %1765, %v288
      %v1767 = vpop.permute.xlu0 %1766
      %1769 = vset.pattern.permute.xlu0 3
      %1770 = vperm.xlu0 %1769, %v289
      %v1771 = vpop.permute.xlu0 %1770
      %1773 = vset.pattern.permute.xlu0 3
      %1774 = vperm.xlu0 %1773, %v290
      %v1775 = vpop.permute.xlu0 %1774
      %1777 = vset.pattern.permute.xlu0 3
      %1778 = vperm.xlu0 %1777, %v291
      %v1779 = vpop.permute.xlu0 %1778
      %1781 = vset.pattern.permute.xlu0 3
      %1782 = vperm.xlu0 %1781, %v292
      %v1783 = vpop.permute.xlu0 %1782
      %v1785 = vlaneseq
      %v1786 = vshrl.u32 %v1785, 7
      %v1787 = vsub.s32 3, %v1786
      %v1788 = vrot.slane %v293, %v1787
      %v1789 = vmul.f32 %v1531, %v1788
      %v1790 = vmul.f32 %v1535, %v1788
      %v1791 = vmul.f32 %v1539, %v1788
      %v1792 = vmul.f32 %v1543, %v1788
      %v1793 = vmul.f32 %v1547, %v1788
      %v1794 = vmul.f32 %v1551, %v1788
      %v1795 = vmul.f32 %v1555, %v1788
      %v1796 = vmul.f32 %v1559, %v1788
      %v1797 = vmul.f32 %v1563, %v1788
      %v1798 = vmul.f32 %v1567, %v1788
      %v1799 = vmul.f32 %v1571, %v1788
      %v1800 = vmul.f32 %v1575, %v1788
      %v1801 = vmul.f32 %v1579, %v1788
      %v1802 = vmul.f32 %v1583, %v1788
      %v1803 = vmul.f32 %v1587, %v1788
      %v1804 = vmul.f32 %v1591, %v1788
      %v1805 = vmul.f32 %v1595, %v1788
      %v1806 = vmul.f32 %v1599, %v1788
      %v1807 = vmul.f32 %v1603, %v1788
      %v1808 = vmul.f32 %v1607, %v1788
      %v1809 = vmul.f32 %v1611, %v1788
      %v1810 = vmul.f32 %v1615, %v1788
      %v1811 = vmul.f32 %v1619, %v1788
      %v1812 = vmul.f32 %v1623, %v1788
      %v1813 = vmul.f32 %v1627, %v1788
      %v1814 = vmul.f32 %v1631, %v1788
      %v1815 = vmul.f32 %v1635, %v1788
      %v1816 = vmul.f32 %v1639, %v1788
      %v1817 = vmul.f32 %v1643, %v1788
      %v1818 = vmul.f32 %v1647, %v1788
      %v1819 = vmul.f32 %v1651, %v1788
      %v1820 = vmul.f32 %v1655, %v1788
      %v1821 = vmul.f32 %v1659, %v1788
      %v1822 = vmul.f32 %v1663, %v1788
      %v1823 = vmul.f32 %v1667, %v1788
      %v1824 = vmul.f32 %v1671, %v1788
      %v1825 = vmul.f32 %v1675, %v1788
      %v1826 = vmul.f32 %v1679, %v1788
      %v1827 = vmul.f32 %v1683, %v1788
      %v1828 = vmul.f32 %v1687, %v1788
      %v1829 = vmul.f32 %v1691, %v1788
      %v1830 = vmul.f32 %v1695, %v1788
      %v1831 = vmul.f32 %v1699, %v1788
      %v1832 = vmul.f32 %v1703, %v1788
      %v1833 = vmul.f32 %v1707, %v1788
      %v1834 = vmul.f32 %v1711, %v1788
      %v1835 = vmul.f32 %v1715, %v1788
      %v1836 = vmul.f32 %v1719, %v1788
      %v1837 = vmul.f32 %v1723, %v1788
      %v1838 = vmul.f32 %v1727, %v1788
      %v1839 = vmul.f32 %v1731, %v1788
      %v1840 = vmul.f32 %v1735, %v1788
      %v1841 = vmul.f32 %v1739, %v1788
      %v1842 = vmul.f32 %v1743, %v1788
      %v1843 = vmul.f32 %v1747, %v1788
      %v1844 = vmul.f32 %v1751, %v1788
      %v1845 = vmul.f32 %v1755, %v1788
      %v1846 = vmul.f32 %v1759, %v1788
      %v1847 = vmul.f32 %v1763, %v1788
      %v1848 = vmul.f32 %v1767, %v1788
      %v1849 = vmul.f32 %v1771, %v1788
      %v1850 = vmul.f32 %v1775, %v1788
      %v1851 = vmul.f32 %v1779, %v1788
      %v1852 = vmul.f32 %v1783, %v1788
      %v1853 = vadd.f32 %v1465, %v1789
      %v1854 = vadd.f32 %v1466, %v1790
      %v1855 = vadd.f32 %v1467, %v1791
      %v1856 = vadd.f32 %v1468, %v1792
      %v1857 = vadd.f32 %v1469, %v1793
      %v1858 = vadd.f32 %v1470, %v1794
      %v1859 = vadd.f32 %v1471, %v1795
      %v1860 = vadd.f32 %v1472, %v1796
      %v1861 = vadd.f32 %v1473, %v1797
      %v1862 = vadd.f32 %v1474, %v1798
      %v1863 = vadd.f32 %v1475, %v1799
      %v1864 = vadd.f32 %v1476, %v1800
      %v1865 = vadd.f32 %v1477, %v1801
      %v1866 = vadd.f32 %v1478, %v1802
      %v1867 = vadd.f32 %v1479, %v1803
      %v1868 = vadd.f32 %v1480, %v1804
      %v1869 = vadd.f32 %v1481, %v1805
      %v1870 = vadd.f32 %v1482, %v1806
      %v1871 = vadd.f32 %v1483, %v1807
      %v1872 = vadd.f32 %v1484, %v1808
      %v1873 = vadd.f32 %v1485, %v1809
      %v1874 = vadd.f32 %v1486, %v1810
      %v1875 = vadd.f32 %v1487, %v1811
      %v1876 = vadd.f32 %v1488, %v1812
      %v1877 = vadd.f32 %v1489, %v1813
      %v1878 = vadd.f32 %v1490, %v1814
      %v1879 = vadd.f32 %v1491, %v1815
      %v1880 = vadd.f32 %v1492, %v1816
      %v1881 = vadd.f32 %v1493, %v1817
      %v1882 = vadd.f32 %v1494, %v1818
      %v1883 = vadd.f32 %v1495, %v1819
      %v1884 = vadd.f32 %v1496, %v1820
      %v1885 = vadd.f32 %v1497, %v1821
      %v1886 = vadd.f32 %v1498, %v1822
      %v1887 = vadd.f32 %v1499, %v1823
      %v1888 = vadd.f32 %v1500, %v1824
      %v1889 = vadd.f32 %v1501, %v1825
      %v1890 = vadd.f32 %v1502, %v1826
      %v1891 = vadd.f32 %v1503, %v1827
      %v1892 = vadd.f32 %v1504, %v1828
      %v1893 = vadd.f32 %v1505, %v1829
      %v1894 = vadd.f32 %v1506, %v1830
      %v1895 = vadd.f32 %v1507, %v1831
      %v1896 = vadd.f32 %v1508, %v1832
      %v1897 = vadd.f32 %v1509, %v1833
      %v1898 = vadd.f32 %v1510, %v1834
      %v1899 = vadd.f32 %v1511, %v1835
      %v1900 = vadd.f32 %v1512, %v1836
      %v1901 = vadd.f32 %v1513, %v1837
      %v1902 = vadd.f32 %v1514, %v1838
      %v1903 = vadd.f32 %v1515, %v1839
      %v1904 = vadd.f32 %v1516, %v1840
      %v1905 = vadd.f32 %v1517, %v1841
      %v1906 = vadd.f32 %v1518, %v1842
      %v1907 = vadd.f32 %v1519, %v1843
      %v1908 = vadd.f32 %v1520, %v1844
      %v1909 = vadd.f32 %v1521, %v1845
      %v1910 = vadd.f32 %v1522, %v1846
      %v1911 = vadd.f32 %v1523, %v1847
      %v1912 = vadd.f32 %v1524, %v1848
      %v1913 = vadd.f32 %v1525, %v1849
      %v1914 = vadd.f32 %v1526, %v1850
      %v1915 = vadd.f32 %v1527, %v1851
      %v1916 = vadd.f32 %v1528, %v1852
      %v1917 = vmax.f32 %v1853, 0.0
      %v1918 = vmax.f32 %v1854, 0.0
      %v1919 = vmax.f32 %v1855, 0.0
      %v1920 = vmax.f32 %v1856, 0.0
      %v1921 = vmax.f32 %v1857, 0.0
      %v1922 = vmax.f32 %v1858, 0.0
      %v1923 = vmax.f32 %v1859, 0.0
      %v1924 = vmax.f32 %v1860, 0.0
      %v1925 = vmax.f32 %v1861, 0.0
      %v1926 = vmax.f32 %v1862, 0.0
      %v1927 = vmax.f32 %v1863, 0.0
      %v1928 = vmax.f32 %v1864, 0.0
      %v1929 = vmax.f32 %v1865, 0.0
      %v1930 = vmax.f32 %v1866, 0.0
      %v1931 = vmax.f32 %v1867, 0.0
      %v1932 = vmax.f32 %v1868, 0.0
      %v1933 = vmax.f32 %v1869, 0.0
      %v1934 = vmax.f32 %v1870, 0.0
      %v1935 = vmax.f32 %v1871, 0.0
      %v1936 = vmax.f32 %v1872, 0.0
      %v1937 = vmax.f32 %v1873, 0.0
      %v1938 = vmax.f32 %v1874, 0.0
      %v1939 = vmax.f32 %v1875, 0.0
      %v1940 = vmax.f32 %v1876, 0.0
      %v1941 = vmax.f32 %v1877, 0.0
      %v1942 = vmax.f32 %v1878, 0.0
      %v1943 = vmax.f32 %v1879, 0.0
      %v1944 = vmax.f32 %v1880, 0.0
      %v1945 = vmax.f32 %v1881, 0.0
      %v1946 = vmax.f32 %v1882, 0.0
      %v1947 = vmax.f32 %v1883, 0.0
      %v1948 = vmax.f32 %v1884, 0.0
      %v1949 = vmax.f32 %v1885, 0.0
      %v1950 = vmax.f32 %v1886, 0.0
      %v1951 = vmax.f32 %v1887, 0.0
      %v1952 = vmax.f32 %v1888, 0.0
      %v1953 = vmax.f32 %v1889, 0.0
      %v1954 = vmax.f32 %v1890, 0.0
      %v1955 = vmax.f32 %v1891, 0.0
      %v1956 = vmax.f32 %v1892, 0.0
      %v1957 = vmax.f32 %v1893, 0.0
      %v1958 = vmax.f32 %v1894, 0.0
      %v1959 = vmax.f32 %v1895, 0.0
      %v1960 = vmax.f32 %v1896, 0.0
      %v1961 = vmax.f32 %v1897, 0.0
      %v1962 = vmax.f32 %v1898, 0.0
      %v1963 = vmax.f32 %v1899, 0.0
      %v1964 = vmax.f32 %v1900, 0.0
      %v1965 = vmax.f32 %v1901, 0.0
      %v1966 = vmax.f32 %v1902, 0.0
      %v1967 = vmax.f32 %v1903, 0.0
      %v1968 = vmax.f32 %v1904, 0.0
      %v1969 = vmax.f32 %v1905, 0.0
      %v1970 = vmax.f32 %v1906, 0.0
      %v1971 = vmax.f32 %v1907, 0.0
      %v1972 = vmax.f32 %v1908, 0.0
      %v1973 = vmax.f32 %v1909, 0.0
      %v1974 = vmax.f32 %v1910, 0.0
      %v1975 = vmax.f32 %v1911, 0.0
      %v1976 = vmax.f32 %v1912, 0.0
      %v1977 = vmax.f32 %v1913, 0.0
      %v1978 = vmax.f32 %v1914, 0.0
      %v1979 = vmax.f32 %v1915, 0.0
      %v1980 = vmax.f32 %v1916, 0.0
      %v1981 = vpack.c.bf16 %v1918, %v1917
      %v1982 = vpack.c.bf16 %v1920, %v1919
      %v1983 = vpack.c.bf16 %v1922, %v1921
      %v1984 = vpack.c.bf16 %v1924, %v1923
      %v1985 = vpack.c.bf16 %v1926, %v1925
      %v1986 = vpack.c.bf16 %v1928, %v1927
      %v1987 = vpack.c.bf16 %v1930, %v1929
      %v1988 = vpack.c.bf16 %v1932, %v1931
      %v1989 = vpack.c.bf16 %v1934, %v1933
      %v1990 = vpack.c.bf16 %v1936, %v1935
      %v1991 = vpack.c.bf16 %v1938, %v1937
      %v1992 = vpack.c.bf16 %v1940, %v1939
      %v1993 = vpack.c.bf16 %v1942, %v1941
      %v1994 = vpack.c.bf16 %v1944, %v1943
      %v1995 = vpack.c.bf16 %v1946, %v1945
      %v1996 = vpack.c.bf16 %v1948, %v1947
      %v1997 = vpack.c.bf16 %v1950, %v1949
      %v1998 = vpack.c.bf16 %v1952, %v1951
      %v1999 = vpack.c.bf16 %v1954, %v1953
      %v2000 = vpack.c.bf16 %v1956, %v1955
      %v2001 = vpack.c.bf16 %v1958, %v1957
      %v2002 = vpack.c.bf16 %v1960, %v1959
      %v2003 = vpack.c.bf16 %v1962, %v1961
      %v2004 = vpack.c.bf16 %v1964, %v1963
      %v2005 = vpack.c.bf16 %v1966, %v1965
      %v2006 = vpack.c.bf16 %v1968, %v1967
      %v2007 = vpack.c.bf16 %v1970, %v1969
      %v2008 = vpack.c.bf16 %v1972, %v1971
      %v2009 = vpack.c.bf16 %v1974, %v1973
      %v2010 = vpack.c.bf16 %v1976, %v1975
      %v2011 = vpack.c.bf16 %v1978, %v1977
      %v2012 = vpack.c.bf16 %v1980, %v1979
      %v2013 = vld [vmem:[%s3] sm:$0xf]
      %v2014 = vld [vmem:[%s3 + $0x4] sm:$0xf]
      %v2015 = vld [vmem:[%s3 + $0x8] sm:$0xf]
      %v2016 = vld [vmem:[%s3 + $0xc] sm:$0xf]
      %v2017 = vld [vmem:[%s3 + $0x10] sm:$0xf]
      %v2018 = vld [vmem:[%s3 + $0x14] sm:$0xf]
      %v2019 = vld [vmem:[%s3 + $0x18] sm:$0xf]
      %v2020 = vld [vmem:[%s3 + $0x1c] sm:$0xf]
      %v2021 = vld [vmem:[%s3 + $0x20] sm:$0xf]
      %v2022 = vld [vmem:[%s3 + $0x24] sm:$0xf]
      %v2023 = vld [vmem:[%s3 + $0x28] sm:$0xf]
      %v2024 = vld [vmem:[%s3 + $0x2c] sm:$0xf]
      %v2025 = vld [vmem:[%s3 + $0x30] sm:$0xf]
      %v2026 = vld [vmem:[%s3 + $0x34] sm:$0xf]
      %v2027 = vld [vmem:[%s3 + $0x38] sm:$0xf]
      %v2028 = vld [vmem:[%s3 + $0x3c] sm:$0xf]
      %v2029 = vld [vmem:[%s4] sm:$0x1]
      %v2031 = vlaneseq
      %v2032 = vshrl.u32 %v2031, 7
      %v2033 = vsub.s32 0, %v2032
      %v2034 = vrot.slane %v2029, %v2033
      %v2052 = vunpack.c.l.b16 %v2013
      %v2053 = vunpack.c.l.b16 %v2014
      %v2054 = vunpack.c.l.b16 %v2015
      %v2055 = vunpack.c.l.b16 %v2016
      %v2056 = vunpack.c.l.b16 %v2017
      %v2057 = vunpack.c.l.b16 %v2018
      %v2058 = vunpack.c.l.b16 %v2019
      %v2059 = vunpack.c.l.b16 %v2020
      %v2060 = vunpack.c.l.b16 %v2021
      %v2061 = vunpack.c.l.b16 %v2022
      %v2062 = vunpack.c.l.b16 %v2023
      %v2063 = vunpack.c.l.b16 %v2024
      %v2064 = vunpack.c.l.b16 %v2025
      %v2065 = vunpack.c.l.b16 %v2026
      %v2066 = vunpack.c.l.b16 %v2027
      %v2067 = vunpack.c.l.b16 %v2028
      %v2068 = vpack.c.b16 %v2053, %v2052
      %v2069 = vpack.c.b16 %v2055, %v2054
      %v2070 = vpack.c.b16 %v2057, %v2056
      %v2071 = vpack.c.b16 %v2059, %v2058
      %v2072 = vpack.c.b16 %v2061, %v2060
      %v2073 = vpack.c.b16 %v2063, %v2062
      %v2074 = vpack.c.b16 %v2065, %v2064
      %v2075 = vpack.c.b16 %v2067, %v2066
      %2084 = vmatprep.subr.bf16.mxu0 0
      %2085 = vmatpush1.bf16.msra.mxu0 %v2075
      %2086 = vmatprep.subr.bf16.mxu0 0
      %2087 = vmatpush1.bf16.msra.mxu0 %v2074
      %2088 = vmatprep.subr.bf16.mxu0 0
      %2089 = vmatpush1.bf16.msra.mxu0 %v2073
      %2090 = vmatprep.subr.bf16.mxu0 0
      %2091 = vmatpush1.bf16.msra.mxu0 %v2072
      %2092 = vmatprep.subr.bf16.mxu0 0
      %2093 = vmatpush1.bf16.msra.mxu0 %v2071
      %2094 = vmatprep.subr.bf16.mxu0 0
      %2095 = vmatpush1.bf16.msra.mxu0 %v2070
      %2096 = vmatprep.subr.bf16.mxu0 0
      %2097 = vmatpush1.bf16.msra.mxu0 %v2069
      %2098 = vmatprep.subr.bf16.mxu0 0
      %2099 = vmatpush1.bf16.msra.mxu0 %v2068
      %2100 = vmatprep.subr.bf16.mxu0 0
      %2101 = vmatpush2.bf16.msra.mxu0 0
      %2102 = vmatprep.subr.bf16.mxu0 0
      %2103 = vmatpush2.bf16.msra.mxu0 0
      %2104 = vmatprep.subr.bf16.mxu0 0
      %2105 = vmatpush2.bf16.msra.mxu0 0
      %2106 = vmatprep.subr.bf16.mxu0 0
      %2107 = vmatpush2.bf16.msra.mxu0 0
      %2108 = vmatprep.subr.bf16.mxu0 0
      %2109 = vmatpush2.bf16.msra.mxu0 0
      %2110 = vmatprep.subr.bf16.mxu0 0
      %2111 = vmatpush2.bf16.msra.mxu0 0
      %2112 = vmatprep.subr.bf16.mxu0 0
      %2113 = vmatpush2.bf16.msra.mxu0 0
      %2114 = vmatprep.subr.bf16.mxu0 0
      %2115 = vmatpush2.bf16.msra.mxu0 0
      %2116 = vmatprep.mubr.bf16.mxu0 0
      %2117 = vmatmul.mubr.bf16.gmra.mxu0 %v1981
      %v2118 = vpop.f32.mrf.mxu0
      %v2119 = vadd.f32 %v2034, %v2118
      %v2120 = vpop.f32.mrf.mxu0
      %v2121 = vpop.f32.mrf.mxu0
      %v2122 = vadd.f32 %v2034, %v2121
      %v2123 = vpop.f32.mrf.mxu0
      %2124 = vmatprep.mubr.bf16.mxu0 0
      %2125 = vmatmul.mubr.bf16.gmra.mxu0 %v1982
      %v2126 = vpop.f32.mrf.mxu0
      %v2127 = vadd.f32 %v2034, %v2126
      %v2128 = vpop.f32.mrf.mxu0
      %v2129 = vpop.f32.mrf.mxu0
      %v2130 = vadd.f32 %v2034, %v2129
      %v2131 = vpop.f32.mrf.mxu0
      %2132 = vmatprep.mubr.bf16.mxu0 0
      %2133 = vmatmul.mubr.bf16.gmra.mxu0 %v1983
      %v2134 = vpop.f32.mrf.mxu0
      %v2135 = vadd.f32 %v2034, %v2134
      %v2136 = vpop.f32.mrf.mxu0
      %v2137 = vpop.f32.mrf.mxu0
      %v2138 = vadd.f32 %v2034, %v2137
      %v2139 = vpop.f32.mrf.mxu0
      %2140 = vmatprep.mubr.bf16.mxu0 0
      %2141 = vmatmul.mubr.bf16.gmra.mxu0 %v1984
      %v2142 = vpop.f32.mrf.mxu0
      %v2143 = vadd.f32 %v2034, %v2142
      %v2144 = vpop.f32.mrf.mxu0
      %v2145 = vpop.f32.mrf.mxu0
      %v2146 = vadd.f32 %v2034, %v2145
      %v2147 = vpop.f32.mrf.mxu0
      %2148 = vmatprep.mubr.bf16.mxu0 0
      %2149 = vmatmul.mubr.bf16.gmra.mxu0 %v1985
      %v2150 = vpop.f32.mrf.mxu0
      %v2151 = vadd.f32 %v2034, %v2150
      %v2152 = vpop.f32.mrf.mxu0
      %v2153 = vpop.f32.mrf.mxu0
      %v2154 = vadd.f32 %v2034, %v2153
      %v2155 = vpop.f32.mrf.mxu0
      %2156 = vmatprep.mubr.bf16.mxu0 0
      %2157 = vmatmul.mubr.bf16.gmra.mxu0 %v1986
      %v2158 = vpop.f32.mrf.mxu0
      %v2159 = vadd.f32 %v2034, %v2158
      %v2160 = vpop.f32.mrf.mxu0
      %v2161 = vpop.f32.mrf.mxu0
      %v2162 = vadd.f32 %v2034, %v2161
      %v2163 = vpop.f32.mrf.mxu0
      %2164 = vmatprep.mubr.bf16.mxu0 0
      %2165 = vmatmul.mubr.bf16.gmra.mxu0 %v1987
      %v2166 = vpop.f32.mrf.mxu0
      %v2167 = vadd.f32 %v2034, %v2166
      %v2168 = vpop.f32.mrf.mxu0
      %v2169 = vpop.f32.mrf.mxu0
      %v2170 = vadd.f32 %v2034, %v2169
      %v2171 = vpop.f32.mrf.mxu0
      %2172 = vmatprep.mubr.bf16.mxu0 0
      %2173 = vmatmul.mubr.bf16.gmra.mxu0 %v1988
      %v2174 = vpop.f32.mrf.mxu0
      %v2175 = vadd.f32 %v2034, %v2174
      %v2176 = vpop.f32.mrf.mxu0
      %v2177 = vpop.f32.mrf.mxu0
      %v2178 = vadd.f32 %v2034, %v2177
      %v2179 = vpop.f32.mrf.mxu0
      %2180 = vmatprep.mubr.bf16.mxu0 0
      %2181 = vmatmul.mubr.bf16.gmra.mxu0 %v1989
      %v2182 = vpop.f32.mrf.mxu0
      %v2183 = vadd.f32 %v2034, %v2182
      %v2184 = vpop.f32.mrf.mxu0
      %v2185 = vpop.f32.mrf.mxu0
      %v2186 = vadd.f32 %v2034, %v2185
      %v2187 = vpop.f32.mrf.mxu0
      %2188 = vmatprep.mubr.bf16.mxu0 0
      %2189 = vmatmul.mubr.bf16.gmra.mxu0 %v1990
      %v2190 = vpop.f32.mrf.mxu0
      %v2191 = vadd.f32 %v2034, %v2190
      %v2192 = vpop.f32.mrf.mxu0
      %v2193 = vpop.f32.mrf.mxu0
      %v2194 = vadd.f32 %v2034, %v2193
      %v2195 = vpop.f32.mrf.mxu0
      %2196 = vmatprep.mubr.bf16.mxu0 0
      %2197 = vmatmul.mubr.bf16.gmra.mxu0 %v1991
      %v2198 = vpop.f32.mrf.mxu0
      %v2199 = vadd.f32 %v2034, %v2198
      %v2200 = vpop.f32.mrf.mxu0
      %v2201 = vpop.f32.mrf.mxu0
      %v2202 = vadd.f32 %v2034, %v2201
      %v2203 = vpop.f32.mrf.mxu0
      %2204 = vmatprep.mubr.bf16.mxu0 0
      %2205 = vmatmul.mubr.bf16.gmra.mxu0 %v1992
      %v2206 = vpop.f32.mrf.mxu0
      %v2207 = vadd.f32 %v2034, %v2206
      %v2208 = vpop.f32.mrf.mxu0
      %v2209 = vpop.f32.mrf.mxu0
      %v2210 = vadd.f32 %v2034, %v2209
      %v2211 = vpop.f32.mrf.mxu0
      %2212 = vmatprep.mubr.bf16.mxu0 0
      %2213 = vmatmul.mubr.bf16.gmra.mxu0 %v1993
      %v2214 = vpop.f32.mrf.mxu0
      %v2215 = vadd.f32 %v2034, %v2214
      %v2216 = vpop.f32.mrf.mxu0
      %v2217 = vpop.f32.mrf.mxu0
      %v2218 = vadd.f32 %v2034, %v2217
      %v2219 = vpop.f32.mrf.mxu0
      %2220 = vmatprep.mubr.bf16.mxu0 0
      %2221 = vmatmul.mubr.bf16.gmra.mxu0 %v1994
      %v2222 = vpop.f32.mrf.mxu0
      %v2223 = vadd.f32 %v2034, %v2222
      %v2224 = vpop.f32.mrf.mxu0
      %v2225 = vpop.f32.mrf.mxu0
      %v2226 = vadd.f32 %v2034, %v2225
      %v2227 = vpop.f32.mrf.mxu0
      %2228 = vmatprep.mubr.bf16.mxu0 0
      %2229 = vmatmul.mubr.bf16.gmra.mxu0 %v1995
      %v2230 = vpop.f32.mrf.mxu0
      %v2231 = vadd.f32 %v2034, %v2230
      %v2232 = vpop.f32.mrf.mxu0
      %v2233 = vpop.f32.mrf.mxu0
      %v2234 = vadd.f32 %v2034, %v2233
      %v2235 = vpop.f32.mrf.mxu0
      %2236 = vmatprep.mubr.bf16.mxu0 0
      %2237 = vmatmul.mubr.bf16.gmra.mxu0 %v1996
      %v2238 = vpop.f32.mrf.mxu0
      %v2239 = vadd.f32 %v2034, %v2238
      %v2240 = vpop.f32.mrf.mxu0
      %v2241 = vpop.f32.mrf.mxu0
      %v2242 = vadd.f32 %v2034, %v2241
      %v2243 = vpop.f32.mrf.mxu0
      %2244 = vmatprep.mubr.bf16.mxu0 0
      %2245 = vmatmul.mubr.bf16.gmra.mxu0 %v1997
      %v2246 = vpop.f32.mrf.mxu0
      %v2247 = vadd.f32 %v2034, %v2246
      %v2248 = vpop.f32.mrf.mxu0
      %v2249 = vpop.f32.mrf.mxu0
      %v2250 = vadd.f32 %v2034, %v2249
      %v2251 = vpop.f32.mrf.mxu0
      %2252 = vmatprep.mubr.bf16.mxu0 0
      %2253 = vmatmul.mubr.bf16.gmra.mxu0 %v1998
      %v2254 = vpop.f32.mrf.mxu0
      %v2255 = vadd.f32 %v2034, %v2254
      %v2256 = vpop.f32.mrf.mxu0
      %v2257 = vpop.f32.mrf.mxu0
      %v2258 = vadd.f32 %v2034, %v2257
      %v2259 = vpop.f32.mrf.mxu0
      %2260 = vmatprep.mubr.bf16.mxu0 0
      %2261 = vmatmul.mubr.bf16.gmra.mxu0 %v1999
      %v2262 = vpop.f32.mrf.mxu0
      %v2263 = vadd.f32 %v2034, %v2262
      %v2264 = vpop.f32.mrf.mxu0
      %v2265 = vpop.f32.mrf.mxu0
      %v2266 = vadd.f32 %v2034, %v2265
      %v2267 = vpop.f32.mrf.mxu0
      %2268 = vmatprep.mubr.bf16.mxu0 0
      %2269 = vmatmul.mubr.bf16.gmra.mxu0 %v2000
      %v2270 = vpop.f32.mrf.mxu0
      %v2271 = vadd.f32 %v2034, %v2270
      %v2272 = vpop.f32.mrf.mxu0
      %v2273 = vpop.f32.mrf.mxu0
      %v2274 = vadd.f32 %v2034, %v2273
      %v2275 = vpop.f32.mrf.mxu0
      %2276 = vmatprep.mubr.bf16.mxu0 0
      %2277 = vmatmul.mubr.bf16.gmra.mxu0 %v2001
      %v2278 = vpop.f32.mrf.mxu0
      %v2279 = vadd.f32 %v2034, %v2278
      %v2280 = vpop.f32.mrf.mxu0
      %v2281 = vpop.f32.mrf.mxu0
      %v2282 = vadd.f32 %v2034, %v2281
      %v2283 = vpop.f32.mrf.mxu0
      %2284 = vmatprep.mubr.bf16.mxu0 0
      %2285 = vmatmul.mubr.bf16.gmra.mxu0 %v2002
      %v2286 = vpop.f32.mrf.mxu0
      %v2287 = vadd.f32 %v2034, %v2286
      %v2288 = vpop.f32.mrf.mxu0
      %v2289 = vpop.f32.mrf.mxu0
      %v2290 = vadd.f32 %v2034, %v2289
      %v2291 = vpop.f32.mrf.mxu0
      %2292 = vmatprep.mubr.bf16.mxu0 0
      %2293 = vmatmul.mubr.bf16.gmra.mxu0 %v2003
      %v2294 = vpop.f32.mrf.mxu0
      %v2295 = vadd.f32 %v2034, %v2294
      %v2296 = vpop.f32.mrf.mxu0
      %v2297 = vpop.f32.mrf.mxu0
      %v2298 = vadd.f32 %v2034, %v2297
      %v2299 = vpop.f32.mrf.mxu0
      %2300 = vmatprep.mubr.bf16.mxu0 0
      %2301 = vmatmul.mubr.bf16.gmra.mxu0 %v2004
      %v2302 = vpop.f32.mrf.mxu0
      %v2303 = vadd.f32 %v2034, %v2302
      %v2304 = vpop.f32.mrf.mxu0
      %v2305 = vpop.f32.mrf.mxu0
      %v2306 = vadd.f32 %v2034, %v2305
      %v2307 = vpop.f32.mrf.mxu0
      %2308 = vmatprep.mubr.bf16.mxu0 0
      %2309 = vmatmul.mubr.bf16.gmra.mxu0 %v2005
      %v2310 = vpop.f32.mrf.mxu0
      %v2311 = vadd.f32 %v2034, %v2310
      %v2312 = vpop.f32.mrf.mxu0
      %v2313 = vpop.f32.mrf.mxu0
      %v2314 = vadd.f32 %v2034, %v2313
      %v2315 = vpop.f32.mrf.mxu0
      %2316 = vmatprep.mubr.bf16.mxu0 0
      %2317 = vmatmul.mubr.bf16.gmra.mxu0 %v2006
      %v2318 = vpop.f32.mrf.mxu0
      %v2319 = vadd.f32 %v2034, %v2318
      %v2320 = vpop.f32.mrf.mxu0
      %v2321 = vpop.f32.mrf.mxu0
      %v2322 = vadd.f32 %v2034, %v2321
      %v2323 = vpop.f32.mrf.mxu0
      %2324 = vmatprep.mubr.bf16.mxu0 0
      %2325 = vmatmul.mubr.bf16.gmra.mxu0 %v2007
      %v2326 = vpop.f32.mrf.mxu0
      %v2327 = vadd.f32 %v2034, %v2326
      %v2328 = vpop.f32.mrf.mxu0
      %v2329 = vpop.f32.mrf.mxu0
      %v2330 = vadd.f32 %v2034, %v2329
      %v2331 = vpop.f32.mrf.mxu0
      %2332 = vmatprep.mubr.bf16.mxu0 0
      %2333 = vmatmul.mubr.bf16.gmra.mxu0 %v2008
      %v2334 = vpop.f32.mrf.mxu0
      %v2335 = vadd.f32 %v2034, %v2334
      %v2336 = vpop.f32.mrf.mxu0
      %v2337 = vpop.f32.mrf.mxu0
      %v2338 = vadd.f32 %v2034, %v2337
      %v2339 = vpop.f32.mrf.mxu0
      %2340 = vmatprep.mubr.bf16.mxu0 0
      %2341 = vmatmul.mubr.bf16.gmra.mxu0 %v2009
      %v2342 = vpop.f32.mrf.mxu0
      %v2343 = vadd.f32 %v2034, %v2342
      %v2344 = vpop.f32.mrf.mxu0
      %v2345 = vpop.f32.mrf.mxu0
      %v2346 = vadd.f32 %v2034, %v2345
      %v2347 = vpop.f32.mrf.mxu0
      %2348 = vmatprep.mubr.bf16.mxu0 0
      %2349 = vmatmul.mubr.bf16.gmra.mxu0 %v2010
      %v2350 = vpop.f32.mrf.mxu0
      %v2351 = vadd.f32 %v2034, %v2350
      %v2352 = vpop.f32.mrf.mxu0
      %v2353 = vpop.f32.mrf.mxu0
      %v2354 = vadd.f32 %v2034, %v2353
      %v2355 = vpop.f32.mrf.mxu0
      %2356 = vmatprep.mubr.bf16.mxu0 0
      %2357 = vmatmul.mubr.bf16.gmra.mxu0 %v2011
      %v2358 = vpop.f32.mrf.mxu0
      %v2359 = vadd.f32 %v2034, %v2358
      %v2360 = vpop.f32.mrf.mxu0
      %v2361 = vpop.f32.mrf.mxu0
      %v2362 = vadd.f32 %v2034, %v2361
      %v2363 = vpop.f32.mrf.mxu0
      %2364 = vmatprep.mubr.bf16.mxu0 0
      %2365 = vmatmul.mubr.bf16.gmra.mxu0 %v2012
      %v2366 = vpop.f32.mrf.mxu0
      %v2367 = vadd.f32 %v2034, %v2366
      %v2368 = vpop.f32.mrf.mxu0
      %v2369 = vpop.f32.mrf.mxu0
      %v2370 = vadd.f32 %v2034, %v2369
      %v2371 = vpop.f32.mrf.mxu0
      %2372 = vdwg.mxu0
      %2373 = vmax.xlane.f32.xlu0 %v2119
      %v2374 = vpop.xlane.xlu0 %2373
      %2375 = vmax.xlane.f32.xlu0 %v2122
      %v2376 = vpop.xlane.xlu0 %2375
      %2377 = vmax.xlane.f32.xlu0 %v2127
      %v2378 = vpop.xlane.xlu0 %2377
      %2379 = vmax.xlane.f32.xlu0 %v2130
      %v2380 = vpop.xlane.xlu0 %2379
      %2381 = vmax.xlane.f32.xlu0 %v2135
      %v2382 = vpop.xlane.xlu0 %2381
      %2383 = vmax.xlane.f32.xlu0 %v2138
      %v2384 = vpop.xlane.xlu0 %2383
      %2385 = vmax.xlane.f32.xlu0 %v2143
      %v2386 = vpop.xlane.xlu0 %2385
      %2387 = vmax.xlane.f32.xlu0 %v2146
      %v2388 = vpop.xlane.xlu0 %2387
      %2389 = vmax.xlane.f32.xlu0 %v2151
      %v2390 = vpop.xlane.xlu0 %2389
      %2391 = vmax.xlane.f32.xlu0 %v2154
      %v2392 = vpop.xlane.xlu0 %2391
      %2393 = vmax.xlane.f32.xlu0 %v2159
      %v2394 = vpop.xlane.xlu0 %2393
      %2395 = vmax.xlane.f32.xlu0 %v2162
      %v2396 = vpop.xlane.xlu0 %2395
      %2397 = vmax.xlane.f32.xlu0 %v2167
      %v2398 = vpop.xlane.xlu0 %2397
      %2399 = vmax.xlane.f32.xlu0 %v2170
      %v2400 = vpop.xlane.xlu0 %2399
      %2401 = vmax.xlane.f32.xlu0 %v2175
      %v2402 = vpop.xlane.xlu0 %2401
      %2403 = vmax.xlane.f32.xlu0 %v2178
      %v2404 = vpop.xlane.xlu0 %2403
      %2405 = vmax.xlane.f32.xlu0 %v2183
      %v2406 = vpop.xlane.xlu0 %2405
      %2407 = vmax.xlane.f32.xlu0 %v2186
      %v2408 = vpop.xlane.xlu0 %2407
      %2409 = vmax.xlane.f32.xlu0 %v2191
      %v2410 = vpop.xlane.xlu0 %2409
      %2411 = vmax.xlane.f32.xlu0 %v2194
      %v2412 = vpop.xlane.xlu0 %2411
      %2413 = vmax.xlane.f32.xlu0 %v2199
      %v2414 = vpop.xlane.xlu0 %2413
      %2415 = vmax.xlane.f32.xlu0 %v2202
      %v2416 = vpop.xlane.xlu0 %2415
      %2417 = vmax.xlane.f32.xlu0 %v2207
      %v2418 = vpop.xlane.xlu0 %2417
      %2419 = vmax.xlane.f32.xlu0 %v2210
      %v2420 = vpop.xlane.xlu0 %2419
      %2421 = vmax.xlane.f32.xlu0 %v2215
      %v2422 = vpop.xlane.xlu0 %2421
      %2423 = vmax.xlane.f32.xlu0 %v2218
      %v2424 = vpop.xlane.xlu0 %2423
      %2425 = vmax.xlane.f32.xlu0 %v2223
      %v2426 = vpop.xlane.xlu0 %2425
      %2427 = vmax.xlane.f32.xlu0 %v2226
      %v2428 = vpop.xlane.xlu0 %2427
      %2429 = vmax.xlane.f32.xlu0 %v2231
      %v2430 = vpop.xlane.xlu0 %2429
      %2431 = vmax.xlane.f32.xlu0 %v2234
      %v2432 = vpop.xlane.xlu0 %2431
      %2433 = vmax.xlane.f32.xlu0 %v2239
      %v2434 = vpop.xlane.xlu0 %2433
      %2435 = vmax.xlane.f32.xlu0 %v2242
      %v2436 = vpop.xlane.xlu0 %2435
      %2437 = vmax.xlane.f32.xlu0 %v2247
      %v2438 = vpop.xlane.xlu0 %2437
      %2439 = vmax.xlane.f32.xlu0 %v2250
      %v2440 = vpop.xlane.xlu0 %2439
      %2441 = vmax.xlane.f32.xlu0 %v2255
      %v2442 = vpop.xlane.xlu0 %2441
      %2443 = vmax.xlane.f32.xlu0 %v2258
      %v2444 = vpop.xlane.xlu0 %2443
      %2445 = vmax.xlane.f32.xlu0 %v2263
      %v2446 = vpop.xlane.xlu0 %2445
      %2447 = vmax.xlane.f32.xlu0 %v2266
      %v2448 = vpop.xlane.xlu0 %2447
      %2449 = vmax.xlane.f32.xlu0 %v2271
      %v2450 = vpop.xlane.xlu0 %2449
      %2451 = vmax.xlane.f32.xlu0 %v2274
      %v2452 = vpop.xlane.xlu0 %2451
      %2453 = vmax.xlane.f32.xlu0 %v2279
      %v2454 = vpop.xlane.xlu0 %2453
      %2455 = vmax.xlane.f32.xlu0 %v2282
      %v2456 = vpop.xlane.xlu0 %2455
      %2457 = vmax.xlane.f32.xlu0 %v2287
      %v2458 = vpop.xlane.xlu0 %2457
      %2459 = vmax.xlane.f32.xlu0 %v2290
      %v2460 = vpop.xlane.xlu0 %2459
      %2461 = vmax.xlane.f32.xlu0 %v2295
      %v2462 = vpop.xlane.xlu0 %2461
      %2463 = vmax.xlane.f32.xlu0 %v2298
      %v2464 = vpop.xlane.xlu0 %2463
      %2465 = vmax.xlane.f32.xlu0 %v2303
      %v2466 = vpop.xlane.xlu0 %2465
      %2467 = vmax.xlane.f32.xlu0 %v2306
      %v2468 = vpop.xlane.xlu0 %2467
      %2469 = vmax.xlane.f32.xlu0 %v2311
      %v2470 = vpop.xlane.xlu0 %2469
      %2471 = vmax.xlane.f32.xlu0 %v2314
      %v2472 = vpop.xlane.xlu0 %2471
      %2473 = vmax.xlane.f32.xlu0 %v2319
      %v2474 = vpop.xlane.xlu0 %2473
      %2475 = vmax.xlane.f32.xlu0 %v2322
      %v2476 = vpop.xlane.xlu0 %2475
      %2477 = vmax.xlane.f32.xlu0 %v2327
      %v2478 = vpop.xlane.xlu0 %2477
      %2479 = vmax.xlane.f32.xlu0 %v2330
      %v2480 = vpop.xlane.xlu0 %2479
      %2481 = vmax.xlane.f32.xlu0 %v2335
      %v2482 = vpop.xlane.xlu0 %2481
      %2483 = vmax.xlane.f32.xlu0 %v2338
      %v2484 = vpop.xlane.xlu0 %2483
      %2485 = vmax.xlane.f32.xlu0 %v2343
      %v2486 = vpop.xlane.xlu0 %2485
      %2487 = vmax.xlane.f32.xlu0 %v2346
      %v2488 = vpop.xlane.xlu0 %2487
      %2489 = vmax.xlane.f32.xlu0 %v2351
      %v2490 = vpop.xlane.xlu0 %2489
      %2491 = vmax.xlane.f32.xlu0 %v2354
      %v2492 = vpop.xlane.xlu0 %2491
      %2493 = vmax.xlane.f32.xlu0 %v2359
      %v2494 = vpop.xlane.xlu0 %2493
      %2495 = vmax.xlane.f32.xlu0 %v2362
      %v2496 = vpop.xlane.xlu0 %2495
      %2497 = vmax.xlane.f32.xlu0 %v2367
      %v2498 = vpop.xlane.xlu0 %2497
      %2499 = vmax.xlane.f32.xlu0 %v2370
      %v2500 = vpop.xlane.xlu0 %2499
      %v2501 = vsub.f32 %v2119, %v2374
      %v2502 = vsub.f32 %v2122, %v2376
      %v2503 = vsub.f32 %v2127, %v2378
      %v2504 = vsub.f32 %v2130, %v2380
      %v2505 = vsub.f32 %v2135, %v2382
      %v2506 = vsub.f32 %v2138, %v2384
      %v2507 = vsub.f32 %v2143, %v2386
      %v2508 = vsub.f32 %v2146, %v2388
      %v2509 = vsub.f32 %v2151, %v2390
      %v2510 = vsub.f32 %v2154, %v2392
      %v2511 = vsub.f32 %v2159, %v2394
      %v2512 = vsub.f32 %v2162, %v2396
      %v2513 = vsub.f32 %v2167, %v2398
      %v2514 = vsub.f32 %v2170, %v2400
      %v2515 = vsub.f32 %v2175, %v2402
      %v2516 = vsub.f32 %v2178, %v2404
      %v2517 = vsub.f32 %v2183, %v2406
      %v2518 = vsub.f32 %v2186, %v2408
      %v2519 = vsub.f32 %v2191, %v2410
      %v2520 = vsub.f32 %v2194, %v2412
      %v2521 = vsub.f32 %v2199, %v2414
      %v2522 = vsub.f32 %v2202, %v2416
      %v2523 = vsub.f32 %v2207, %v2418
      %v2524 = vsub.f32 %v2210, %v2420
      %v2525 = vsub.f32 %v2215, %v2422
      %v2526 = vsub.f32 %v2218, %v2424
      %v2527 = vsub.f32 %v2223, %v2426
      %v2528 = vsub.f32 %v2226, %v2428
      %v2529 = vsub.f32 %v2231, %v2430
      %v2530 = vsub.f32 %v2234, %v2432
      %v2531 = vsub.f32 %v2239, %v2434
      %v2532 = vsub.f32 %v2242, %v2436
      %v2533 = vsub.f32 %v2247, %v2438
      %v2534 = vsub.f32 %v2250, %v2440
      %v2535 = vsub.f32 %v2255, %v2442
      %v2536 = vsub.f32 %v2258, %v2444
      %v2537 = vsub.f32 %v2263, %v2446
      %v2538 = vsub.f32 %v2266, %v2448
      %v2539 = vsub.f32 %v2271, %v2450
      %v2540 = vsub.f32 %v2274, %v2452
      %v2541 = vsub.f32 %v2279, %v2454
      %v2542 = vsub.f32 %v2282, %v2456
      %v2543 = vsub.f32 %v2287, %v2458
      %v2544 = vsub.f32 %v2290, %v2460
      %v2545 = vsub.f32 %v2295, %v2462
      %v2546 = vsub.f32 %v2298, %v2464
      %v2547 = vsub.f32 %v2303, %v2466
      %v2548 = vsub.f32 %v2306, %v2468
      %v2549 = vsub.f32 %v2311, %v2470
      %v2550 = vsub.f32 %v2314, %v2472
      %v2551 = vsub.f32 %v2319, %v2474
      %v2552 = vsub.f32 %v2322, %v2476
      %v2553 = vsub.f32 %v2327, %v2478
      %v2554 = vsub.f32 %v2330, %v2480
      %v2555 = vsub.f32 %v2335, %v2482
      %v2556 = vsub.f32 %v2338, %v2484
      %v2557 = vsub.f32 %v2343, %v2486
      %v2558 = vsub.f32 %v2346, %v2488
      %v2559 = vsub.f32 %v2351, %v2490
      %v2560 = vsub.f32 %v2354, %v2492
      %v2561 = vsub.f32 %v2359, %v2494
      %v2562 = vsub.f32 %v2362, %v2496
      %v2563 = vsub.f32 %v2367, %v2498
      %v2564 = vsub.f32 %v2370, %v2500
      %v2565 = vmul.f32 %v2501, 1.442695
      %v2566 = vpow.pop %v2565
      %v2567 = vmul.f32 %v2502, 1.442695
      %v2568 = vpow.pop %v2567
      %v2569 = vmul.f32 %v2503, 1.442695
      %v2570 = vpow.pop %v2569
      %v2571 = vmul.f32 %v2504, 1.442695
      %v2572 = vpow.pop %v2571
      %v2573 = vmul.f32 %v2505, 1.442695
      %v2574 = vpow.pop %v2573
      %v2575 = vmul.f32 %v2506, 1.442695
      %v2576 = vpow.pop %v2575
      %v2577 = vmul.f32 %v2507, 1.442695
      %v2578 = vpow.pop %v2577
      %v2579 = vmul.f32 %v2508, 1.442695
      %v2580 = vpow.pop %v2579
      %v2581 = vmul.f32 %v2509, 1.442695
      %v2582 = vpow.pop %v2581
      %v2583 = vmul.f32 %v2510, 1.442695
      %v2584 = vpow.pop %v2583
      %v2585 = vmul.f32 %v2511, 1.442695
      %v2586 = vpow.pop %v2585
      %v2587 = vmul.f32 %v2512, 1.442695
      %v2588 = vpow.pop %v2587
      %v2589 = vmul.f32 %v2513, 1.442695
      %v2590 = vpow.pop %v2589
      %v2591 = vmul.f32 %v2514, 1.442695
      %v2592 = vpow.pop %v2591
      %v2593 = vmul.f32 %v2515, 1.442695
      %v2594 = vpow.pop %v2593
      %v2595 = vmul.f32 %v2516, 1.442695
      %v2596 = vpow.pop %v2595
      %v2597 = vmul.f32 %v2517, 1.442695
      %v2598 = vpow.pop %v2597
      %v2599 = vmul.f32 %v2518, 1.442695
      %v2600 = vpow.pop %v2599
      %v2601 = vmul.f32 %v2519, 1.442695
      %v2602 = vpow.pop %v2601
      %v2603 = vmul.f32 %v2520, 1.442695
      %v2604 = vpow.pop %v2603
      %v2605 = vmul.f32 %v2521, 1.442695
      %v2606 = vpow.pop %v2605
      %v2607 = vmul.f32 %v2522, 1.442695
      %v2608 = vpow.pop %v2607
      %v2609 = vmul.f32 %v2523, 1.442695
      %v2610 = vpow.pop %v2609
      %v2611 = vmul.f32 %v2524, 1.442695
      %v2612 = vpow.pop %v2611
      %v2613 = vmul.f32 %v2525, 1.442695
      %v2614 = vpow.pop %v2613
      %v2615 = vmul.f32 %v2526, 1.442695
      %v2616 = vpow.pop %v2615
      %v2617 = vmul.f32 %v2527, 1.442695
      %v2618 = vpow.pop %v2617
      %v2619 = vmul.f32 %v2528, 1.442695
      %v2620 = vpow.pop %v2619
      %v2621 = vmul.f32 %v2529, 1.442695
      %v2622 = vpow.pop %v2621
      %v2623 = vmul.f32 %v2530, 1.442695
      %v2624 = vpow.pop %v2623
      %v2625 = vmul.f32 %v2531, 1.442695
      %v2626 = vpow.pop %v2625
      %v2627 = vmul.f32 %v2532, 1.442695
      %v2628 = vpow.pop %v2627
      %v2629 = vmul.f32 %v2533, 1.442695
      %v2630 = vpow.pop %v2629
      %v2631 = vmul.f32 %v2534, 1.442695
      %v2632 = vpow.pop %v2631
      %v2633 = vmul.f32 %v2535, 1.442695
      %v2634 = vpow.pop %v2633
      %v2635 = vmul.f32 %v2536, 1.442695
      %v2636 = vpow.pop %v2635
      %v2637 = vmul.f32 %v2537, 1.442695
      %v2638 = vpow.pop %v2637
      %v2639 = vmul.f32 %v2538, 1.442695
      %v2640 = vpow.pop %v2639
      %v2641 = vmul.f32 %v2539, 1.442695
      %v2642 = vpow.pop %v2641
      %v2643 = vmul.f32 %v2540, 1.442695
      %v2644 = vpow.pop %v2643
      %v2645 = vmul.f32 %v2541, 1.442695
      %v2646 = vpow.pop %v2645
      %v2647 = vmul.f32 %v2542, 1.442695
      %v2648 = vpow.pop %v2647
      %v2649 = vmul.f32 %v2543, 1.442695
      %v2650 = vpow.pop %v2649
      %v2651 = vmul.f32 %v2544, 1.442695
      %v2652 = vpow.pop %v2651
      %v2653 = vmul.f32 %v2545, 1.442695
      %v2654 = vpow.pop %v2653
      %v2655 = vmul.f32 %v2546, 1.442695
      %v2656 = vpow.pop %v2655
      %v2657 = vmul.f32 %v2547, 1.442695
      %v2658 = vpow.pop %v2657
      %v2659 = vmul.f32 %v2548, 1.442695
      %v2660 = vpow.pop %v2659
      %v2661 = vmul.f32 %v2549, 1.442695
      %v2662 = vpow.pop %v2661
      %v2663 = vmul.f32 %v2550, 1.442695
      %v2664 = vpow.pop %v2663
      %v2665 = vmul.f32 %v2551, 1.442695
      %v2666 = vpow.pop %v2665
      %v2667 = vmul.f32 %v2552, 1.442695
      %v2668 = vpow.pop %v2667
      %v2669 = vmul.f32 %v2553, 1.442695
      %v2670 = vpow.pop %v2669
      %v2671 = vmul.f32 %v2554, 1.442695
      %v2672 = vpow.pop %v2671
      %v2673 = vmul.f32 %v2555, 1.442695
      %v2674 = vpow.pop %v2673
      %v2675 = vmul.f32 %v2556, 1.442695
      %v2676 = vpow.pop %v2675
      %v2677 = vmul.f32 %v2557, 1.442695
      %v2678 = vpow.pop %v2677
      %v2679 = vmul.f32 %v2558, 1.442695
      %v2680 = vpow.pop %v2679
      %v2681 = vmul.f32 %v2559, 1.442695
      %v2682 = vpow.pop %v2681
      %v2683 = vmul.f32 %v2560, 1.442695
      %v2684 = vpow.pop %v2683
      %v2685 = vmul.f32 %v2561, 1.442695
      %v2686 = vpow.pop %v2685
      %v2687 = vmul.f32 %v2562, 1.442695
      %v2688 = vpow.pop %v2687
      %v2689 = vmul.f32 %v2563, 1.442695
      %v2690 = vpow.pop %v2689
      %v2691 = vmul.f32 %v2564, 1.442695
      %v2692 = vpow.pop %v2691
      %2693 = vadd.xlane.f32.xlu0 %v2566
      %v2694 = vpop.xlane.xlu0 %2693
      %2695 = vadd.xlane.f32.xlu0 %v2568
      %v2696 = vpop.xlane.xlu0 %2695
      %2697 = vadd.xlane.f32.xlu0 %v2570
      %v2698 = vpop.xlane.xlu0 %2697
      %2699 = vadd.xlane.f32.xlu0 %v2572
      %v2700 = vpop.xlane.xlu0 %2699
      %2701 = vadd.xlane.f32.xlu0 %v2574
      %v2702 = vpop.xlane.xlu0 %2701
      %2703 = vadd.xlane.f32.xlu0 %v2576
      %v2704 = vpop.xlane.xlu0 %2703
      %2705 = vadd.xlane.f32.xlu0 %v2578
      %v2706 = vpop.xlane.xlu0 %2705
      %2707 = vadd.xlane.f32.xlu0 %v2580
      %v2708 = vpop.xlane.xlu0 %2707
      %2709 = vadd.xlane.f32.xlu0 %v2582
      %v2710 = vpop.xlane.xlu0 %2709
      %2711 = vadd.xlane.f32.xlu0 %v2584
      %v2712 = vpop.xlane.xlu0 %2711
      %2713 = vadd.xlane.f32.xlu0 %v2586
      %v2714 = vpop.xlane.xlu0 %2713
      %2715 = vadd.xlane.f32.xlu0 %v2588
      %v2716 = vpop.xlane.xlu0 %2715
      %2717 = vadd.xlane.f32.xlu0 %v2590
      %v2718 = vpop.xlane.xlu0 %2717
      %2719 = vadd.xlane.f32.xlu0 %v2592
      %v2720 = vpop.xlane.xlu0 %2719
      %2721 = vadd.xlane.f32.xlu0 %v2594
      %v2722 = vpop.xlane.xlu0 %2721
      %2723 = vadd.xlane.f32.xlu0 %v2596
      %v2724 = vpop.xlane.xlu0 %2723
      %2725 = vadd.xlane.f32.xlu0 %v2598
      %v2726 = vpop.xlane.xlu0 %2725
      %2727 = vadd.xlane.f32.xlu0 %v2600
      %v2728 = vpop.xlane.xlu0 %2727
      %2729 = vadd.xlane.f32.xlu0 %v2602
      %v2730 = vpop.xlane.xlu0 %2729
      %2731 = vadd.xlane.f32.xlu0 %v2604
      %v2732 = vpop.xlane.xlu0 %2731
      %2733 = vadd.xlane.f32.xlu0 %v2606
      %v2734 = vpop.xlane.xlu0 %2733
      %2735 = vadd.xlane.f32.xlu0 %v2608
      %v2736 = vpop.xlane.xlu0 %2735
      %2737 = vadd.xlane.f32.xlu0 %v2610
      %v2738 = vpop.xlane.xlu0 %2737
      %2739 = vadd.xlane.f32.xlu0 %v2612
      %v2740 = vpop.xlane.xlu0 %2739
      %2741 = vadd.xlane.f32.xlu0 %v2614
      %v2742 = vpop.xlane.xlu0 %2741
      %2743 = vadd.xlane.f32.xlu0 %v2616
      %v2744 = vpop.xlane.xlu0 %2743
      %2745 = vadd.xlane.f32.xlu0 %v2618
      %v2746 = vpop.xlane.xlu0 %2745
      %2747 = vadd.xlane.f32.xlu0 %v2620
      %v2748 = vpop.xlane.xlu0 %2747
      %2749 = vadd.xlane.f32.xlu0 %v2622
      %v2750 = vpop.xlane.xlu0 %2749
      %2751 = vadd.xlane.f32.xlu0 %v2624
      %v2752 = vpop.xlane.xlu0 %2751
      %2753 = vadd.xlane.f32.xlu0 %v2626
      %v2754 = vpop.xlane.xlu0 %2753
      %2755 = vadd.xlane.f32.xlu0 %v2628
      %v2756 = vpop.xlane.xlu0 %2755
      %2757 = vadd.xlane.f32.xlu0 %v2630
      %v2758 = vpop.xlane.xlu0 %2757
      %2759 = vadd.xlane.f32.xlu0 %v2632
      %v2760 = vpop.xlane.xlu0 %2759
      %2761 = vadd.xlane.f32.xlu0 %v2634
      %v2762 = vpop.xlane.xlu0 %2761
      %2763 = vadd.xlane.f32.xlu0 %v2636
      %v2764 = vpop.xlane.xlu0 %2763
      %2765 = vadd.xlane.f32.xlu0 %v2638
      %v2766 = vpop.xlane.xlu0 %2765
      %2767 = vadd.xlane.f32.xlu0 %v2640
      %v2768 = vpop.xlane.xlu0 %2767
      %2769 = vadd.xlane.f32.xlu0 %v2642
      %v2770 = vpop.xlane.xlu0 %2769
      %2771 = vadd.xlane.f32.xlu0 %v2644
      %v2772 = vpop.xlane.xlu0 %2771
      %2773 = vadd.xlane.f32.xlu0 %v2646
      %v2774 = vpop.xlane.xlu0 %2773
      %2775 = vadd.xlane.f32.xlu0 %v2648
      %v2776 = vpop.xlane.xlu0 %2775
      %2777 = vadd.xlane.f32.xlu0 %v2650
      %v2778 = vpop.xlane.xlu0 %2777
      %2779 = vadd.xlane.f32.xlu0 %v2652
      %v2780 = vpop.xlane.xlu0 %2779
      %2781 = vadd.xlane.f32.xlu0 %v2654
      %v2782 = vpop.xlane.xlu0 %2781
      %2783 = vadd.xlane.f32.xlu0 %v2656
      %v2784 = vpop.xlane.xlu0 %2783
      %2785 = vadd.xlane.f32.xlu0 %v2658
      %v2786 = vpop.xlane.xlu0 %2785
      %2787 = vadd.xlane.f32.xlu0 %v2660
      %v2788 = vpop.xlane.xlu0 %2787
      %2789 = vadd.xlane.f32.xlu0 %v2662
      %v2790 = vpop.xlane.xlu0 %2789
      %2791 = vadd.xlane.f32.xlu0 %v2664
      %v2792 = vpop.xlane.xlu0 %2791
      %2793 = vadd.xlane.f32.xlu0 %v2666
      %v2794 = vpop.xlane.xlu0 %2793
      %2795 = vadd.xlane.f32.xlu0 %v2668
      %v2796 = vpop.xlane.xlu0 %2795
      %2797 = vadd.xlane.f32.xlu0 %v2670
      %v2798 = vpop.xlane.xlu0 %2797
      %2799 = vadd.xlane.f32.xlu0 %v2672
      %v2800 = vpop.xlane.xlu0 %2799
      %2801 = vadd.xlane.f32.xlu0 %v2674
      %v2802 = vpop.xlane.xlu0 %2801
      %2803 = vadd.xlane.f32.xlu0 %v2676
      %v2804 = vpop.xlane.xlu0 %2803
      %2805 = vadd.xlane.f32.xlu0 %v2678
      %v2806 = vpop.xlane.xlu0 %2805
      %2807 = vadd.xlane.f32.xlu0 %v2680
      %v2808 = vpop.xlane.xlu0 %2807
      %2809 = vadd.xlane.f32.xlu0 %v2682
      %v2810 = vpop.xlane.xlu0 %2809
      %2811 = vadd.xlane.f32.xlu0 %v2684
      %v2812 = vpop.xlane.xlu0 %2811
      %2813 = vadd.xlane.f32.xlu0 %v2686
      %v2814 = vpop.xlane.xlu0 %2813
      %2815 = vadd.xlane.f32.xlu0 %v2688
      %v2816 = vpop.xlane.xlu0 %2815
      %2817 = vadd.xlane.f32.xlu0 %v2690
      %v2818 = vpop.xlane.xlu0 %2817
      %2819 = vadd.xlane.f32.xlu0 %v2692
      %v2820 = vpop.xlane.xlu0 %2819
      %v2821 = vrcp.pop %v2694
      %v2822 = vmul.f32 %v2566, %v2821
      %v2823 = vrcp.pop %v2696
      %v2824 = vmul.f32 %v2568, %v2823
      %v2825 = vrcp.pop %v2698
      %v2826 = vmul.f32 %v2570, %v2825
      %v2827 = vrcp.pop %v2700
      %v2828 = vmul.f32 %v2572, %v2827
      %v2829 = vrcp.pop %v2702
      %v2830 = vmul.f32 %v2574, %v2829
      %v2831 = vrcp.pop %v2704
      %v2832 = vmul.f32 %v2576, %v2831
      %v2833 = vrcp.pop %v2706
      %v2834 = vmul.f32 %v2578, %v2833
      %v2835 = vrcp.pop %v2708
      %v2836 = vmul.f32 %v2580, %v2835
      %v2837 = vrcp.pop %v2710
      %v2838 = vmul.f32 %v2582, %v2837
      %v2839 = vrcp.pop %v2712
      %v2840 = vmul.f32 %v2584, %v2839
      %v2841 = vrcp.pop %v2714
      %v2842 = vmul.f32 %v2586, %v2841
      %v2843 = vrcp.pop %v2716
      %v2844 = vmul.f32 %v2588, %v2843
      %v2845 = vrcp.pop %v2718
      %v2846 = vmul.f32 %v2590, %v2845
      %v2847 = vrcp.pop %v2720
      %v2848 = vmul.f32 %v2592, %v2847
      %v2849 = vrcp.pop %v2722
      %v2850 = vmul.f32 %v2594, %v2849
      %v2851 = vrcp.pop %v2724
      %v2852 = vmul.f32 %v2596, %v2851
      %v2853 = vrcp.pop %v2726
      %v2854 = vmul.f32 %v2598, %v2853
      %v2855 = vrcp.pop %v2728
      %v2856 = vmul.f32 %v2600, %v2855
      %v2857 = vrcp.pop %v2730
      %v2858 = vmul.f32 %v2602, %v2857
      %v2859 = vrcp.pop %v2732
      %v2860 = vmul.f32 %v2604, %v2859
      %v2861 = vrcp.pop %v2734
      %v2862 = vmul.f32 %v2606, %v2861
      %v2863 = vrcp.pop %v2736
      %v2864 = vmul.f32 %v2608, %v2863
      %v2865 = vrcp.pop %v2738
      %v2866 = vmul.f32 %v2610, %v2865
      %v2867 = vrcp.pop %v2740
      %v2868 = vmul.f32 %v2612, %v2867
      %v2869 = vrcp.pop %v2742
      %v2870 = vmul.f32 %v2614, %v2869
      %v2871 = vrcp.pop %v2744
      %v2872 = vmul.f32 %v2616, %v2871
      %v2873 = vrcp.pop %v2746
      %v2874 = vmul.f32 %v2618, %v2873
      %v2875 = vrcp.pop %v2748
      %v2876 = vmul.f32 %v2620, %v2875
      %v2877 = vrcp.pop %v2750
      %v2878 = vmul.f32 %v2622, %v2877
      %v2879 = vrcp.pop %v2752
      %v2880 = vmul.f32 %v2624, %v2879
      %v2881 = vrcp.pop %v2754
      %v2882 = vmul.f32 %v2626, %v2881
      %v2883 = vrcp.pop %v2756
      %v2884 = vmul.f32 %v2628, %v2883
      %v2885 = vrcp.pop %v2758
      %v2886 = vmul.f32 %v2630, %v2885
      %v2887 = vrcp.pop %v2760
      %v2888 = vmul.f32 %v2632, %v2887
      %v2889 = vrcp.pop %v2762
      %v2890 = vmul.f32 %v2634, %v2889
      %v2891 = vrcp.pop %v2764
      %v2892 = vmul.f32 %v2636, %v2891
      %v2893 = vrcp.pop %v2766
      %v2894 = vmul.f32 %v2638, %v2893
      %v2895 = vrcp.pop %v2768
      %v2896 = vmul.f32 %v2640, %v2895
      %v2897 = vrcp.pop %v2770
      %v2898 = vmul.f32 %v2642, %v2897
      %v2899 = vrcp.pop %v2772
      %v2900 = vmul.f32 %v2644, %v2899
      %v2901 = vrcp.pop %v2774
      %v2902 = vmul.f32 %v2646, %v2901
      %v2903 = vrcp.pop %v2776
      %v2904 = vmul.f32 %v2648, %v2903
      %v2905 = vrcp.pop %v2778
      %v2906 = vmul.f32 %v2650, %v2905
      %v2907 = vrcp.pop %v2780
      %v2908 = vmul.f32 %v2652, %v2907
      %v2909 = vrcp.pop %v2782
      %v2910 = vmul.f32 %v2654, %v2909
      %v2911 = vrcp.pop %v2784
      %v2912 = vmul.f32 %v2656, %v2911
      %v2913 = vrcp.pop %v2786
      %v2914 = vmul.f32 %v2658, %v2913
      %v2915 = vrcp.pop %v2788
      %v2916 = vmul.f32 %v2660, %v2915
      %v2917 = vrcp.pop %v2790
      %v2918 = vmul.f32 %v2662, %v2917
      %v2919 = vrcp.pop %v2792
      %v2920 = vmul.f32 %v2664, %v2919
      %v2921 = vrcp.pop %v2794
      %v2922 = vmul.f32 %v2666, %v2921
      %v2923 = vrcp.pop %v2796
      %v2924 = vmul.f32 %v2668, %v2923
      %v2925 = vrcp.pop %v2798
      %v2926 = vmul.f32 %v2670, %v2925
      %v2927 = vrcp.pop %v2800
      %v2928 = vmul.f32 %v2672, %v2927
      %v2929 = vrcp.pop %v2802
      %v2930 = vmul.f32 %v2674, %v2929
      %v2931 = vrcp.pop %v2804
      %v2932 = vmul.f32 %v2676, %v2931
      %v2933 = vrcp.pop %v2806
      %v2934 = vmul.f32 %v2678, %v2933
      %v2935 = vrcp.pop %v2808
      %v2936 = vmul.f32 %v2680, %v2935
      %v2937 = vrcp.pop %v2810
      %v2938 = vmul.f32 %v2682, %v2937
      %v2939 = vrcp.pop %v2812
      %v2940 = vmul.f32 %v2684, %v2939
      %v2941 = vrcp.pop %v2814
      %v2942 = vmul.f32 %v2686, %v2941
      %v2943 = vrcp.pop %v2816
      %v2944 = vmul.f32 %v2688, %v2943
      %v2945 = vrcp.pop %v2818
      %v2946 = vmul.f32 %v2690, %v2945
      %v2947 = vrcp.pop %v2820
      %v2948 = vmul.f32 %v2692, %v2947
      %vm2949 = vcmask 64512
      %2950 = vst.msk [vmem:[%s226] sm:$0xff] %vm2949, %v2822
      %2951 = vst.msk [vmem:[%s226 + $0x8] sm:$0xff] %vm2949, %v2824
      %2952 = vst.msk [vmem:[%s226 + $0x10] sm:$0xff] %vm2949, %v2826
      %2953 = vst.msk [vmem:[%s226 + $0x18] sm:$0xff] %vm2949, %v2828
      %2954 = vst.msk [vmem:[%s226 + $0x20] sm:$0xff] %vm2949, %v2830
      %2955 = vst.msk [vmem:[%s226 + $0x28] sm:$0xff] %vm2949, %v2832
      %2956 = vst.msk [vmem:[%s226 + $0x30] sm:$0xff] %vm2949, %v2834
      %2957 = vst.msk [vmem:[%s226 + $0x38] sm:$0xff] %vm2949, %v2836
      %2958 = vst.msk [vmem:[%s226 + $0x40] sm:$0xff] %vm2949, %v2838
      %2959 = vst.msk [vmem:[%s226 + $0x48] sm:$0xff] %vm2949, %v2840
      %2960 = vst.msk [vmem:[%s226 + $0x50] sm:$0xff] %vm2949, %v2842
      %2961 = vst.msk [vmem:[%s226 + $0x58] sm:$0xff] %vm2949, %v2844
      %2962 = vst.msk [vmem:[%s226 + $0x60] sm:$0xff] %vm2949, %v2846
      %2963 = vst.msk [vmem:[%s226 + $0x68] sm:$0xff] %vm2949, %v2848
      %2964 = vst.msk [vmem:[%s226 + $0x70] sm:$0xff] %vm2949, %v2850
      %2965 = vst.msk [vmem:[%s226 + $0x78] sm:$0xff] %vm2949, %v2852
      %2966 = vst.msk [vmem:[%s226 + $0x80] sm:$0xff] %vm2949, %v2854
      %2967 = vst.msk [vmem:[%s226 + $0x88] sm:$0xff] %vm2949, %v2856
      %2968 = vst.msk [vmem:[%s226 + $0x90] sm:$0xff] %vm2949, %v2858
      %2969 = vst.msk [vmem:[%s226 + $0x98] sm:$0xff] %vm2949, %v2860
      %2970 = vst.msk [vmem:[%s226 + $0xa0] sm:$0xff] %vm2949, %v2862
      %2971 = vst.msk [vmem:[%s226 + $0xa8] sm:$0xff] %vm2949, %v2864
      %2972 = vst.msk [vmem:[%s226 + $0xb0] sm:$0xff] %vm2949, %v2866
      %2973 = vst.msk [vmem:[%s226 + $0xb8] sm:$0xff] %vm2949, %v2868
      %2974 = vst.msk [vmem:[%s226 + $0xc0] sm:$0xff] %vm2949, %v2870
      %2975 = vst.msk [vmem:[%s226 + $0xc8] sm:$0xff] %vm2949, %v2872
      %2976 = vst.msk [vmem:[%s226 + $0xd0] sm:$0xff] %vm2949, %v2874
      %2977 = vst.msk [vmem:[%s226 + $0xd8] sm:$0xff] %vm2949, %v2876
      %2978 = vst.msk [vmem:[%s226 + $0xe0] sm:$0xff] %vm2949, %v2878
      %2979 = vst.msk [vmem:[%s226 + $0xe8] sm:$0xff] %vm2949, %v2880
      %2980 = vst.msk [vmem:[%s226 + $0xf0] sm:$0xff] %vm2949, %v2882
      %2981 = vst.msk [vmem:[%s226 + $0xf8] sm:$0xff] %vm2949, %v2884
      %2982 = vst.msk [vmem:[%s226 + $0x100] sm:$0xff] %vm2949, %v2886
      %2983 = vst.msk [vmem:[%s226 + $0x108] sm:$0xff] %vm2949, %v2888
      %2984 = vst.msk [vmem:[%s226 + $0x110] sm:$0xff] %vm2949, %v2890
      %2985 = vst.msk [vmem:[%s226 + $0x118] sm:$0xff] %vm2949, %v2892
      %2986 = vst.msk [vmem:[%s226 + $0x120] sm:$0xff] %vm2949, %v2894
      %2987 = vst.msk [vmem:[%s226 + $0x128] sm:$0xff] %vm2949, %v2896
      %2988 = vst.msk [vmem:[%s226 + $0x130] sm:$0xff] %vm2949, %v2898
      %2989 = vst.msk [vmem:[%s226 + $0x138] sm:$0xff] %vm2949, %v2900
      %2990 = vst.msk [vmem:[%s226 + $0x140] sm:$0xff] %vm2949, %v2902
      %2991 = vst.msk [vmem:[%s226 + $0x148] sm:$0xff] %vm2949, %v2904
      %2992 = vst.msk [vmem:[%s226 + $0x150] sm:$0xff] %vm2949, %v2906
      %2993 = vst.msk [vmem:[%s226 + $0x158] sm:$0xff] %vm2949, %v2908
      %2994 = vst.msk [vmem:[%s226 + $0x160] sm:$0xff] %vm2949, %v2910
      %2995 = vst.msk [vmem:[%s226 + $0x168] sm:$0xff] %vm2949, %v2912
      %2996 = vst.msk [vmem:[%s226 + $0x170] sm:$0xff] %vm2949, %v2914
      %2997 = vst.msk [vmem:[%s226 + $0x178] sm:$0xff] %vm2949, %v2916
      %2998 = vst.msk [vmem:[%s226 + $0x180] sm:$0xff] %vm2949, %v2918
      %2999 = vst.msk [vmem:[%s226 + $0x188] sm:$0xff] %vm2949, %v2920
      %3000 = vst.msk [vmem:[%s226 + $0x190] sm:$0xff] %vm2949, %v2922
      %3001 = vst.msk [vmem:[%s226 + $0x198] sm:$0xff] %vm2949, %v2924
      %3002 = vst.msk [vmem:[%s226 + $0x1a0] sm:$0xff] %vm2949, %v2926
      %3003 = vst.msk [vmem:[%s226 + $0x1a8] sm:$0xff] %vm2949, %v2928
      %3004 = vst.msk [vmem:[%s226 + $0x1b0] sm:$0xff] %vm2949, %v2930
      %3005 = vst.msk [vmem:[%s226 + $0x1b8] sm:$0xff] %vm2949, %v2932
      %3006 = vst.msk [vmem:[%s226 + $0x1c0] sm:$0xff] %vm2949, %v2934
      %3007 = vst.msk [vmem:[%s226 + $0x1c8] sm:$0xff] %vm2949, %v2936
      %3008 = vst.msk [vmem:[%s226 + $0x1d0] sm:$0xff] %vm2949, %v2938
      %3009 = vst.msk [vmem:[%s226 + $0x1d8] sm:$0xff] %vm2949, %v2940
      %3010 = vst.msk [vmem:[%s226 + $0x1e0] sm:$0xff] %vm2949, %v2942
      %3011 = vst.msk [vmem:[%s226 + $0x1e8] sm:$0xff] %vm2949, %v2944
      %3012 = vst.msk [vmem:[%s226 + $0x1f0] sm:$0xff] %vm2949, %v2946
      %3013 = vst.msk [vmem:[%s226 + $0x1f8] sm:$0xff] %vm2949, %v2948
      %s3014 = smul.u32 64, %s16
      %p3015 = scmp.lt.s32.totalorder %s3014, 127
      %s3016 = scalar_select %p3015, %s3014, 127
      %s3017 = smul.addr %s3016, 8
      %s3018 = scalar_lea.vmem %s5, %s3017
      // Predicated region
      $region41: #{tpu_custom_call.1} parent=39 // pred_check
        %p3019 = pneg %p144
      $region42: #{tpu_custom_call.1} parent=39 // pred_check_branch
        %3021 = sbr.rel (%p3019) target = $region44
      $region43: #{tpu_custom_call.1} parent=39 // pred_region
        %s3022 = smul.u32 64, %s16
      $region44: #{tpu_custom_call.1} parent=39 // pred_fallthru
        _
    $region40: #{tpu_custom_call.1} parent=5 // pred_fallthru
      _
    %p3023 = scmp.le.s32.totalorder 2, %s11
    // Predicated region
    $region45: #{tpu_custom_call.1} parent=5 // pred_check
      %p3024 = pneg %p3023
    $region46: #{tpu_custom_call.1} parent=5 // pred_check_branch
      %3026 = sbr.rel (%p3024) target = $region48
    $region47: #{tpu_custom_call.1} parent=5 // pred_region
      %s3027 = ssub.s32 %s11, 2
      // Predicated region
      $region49: #{tpu_custom_call.1} parent=47 // pred_check
        %p3028 = pneg %p150
      $region50: #{tpu_custom_call.1} parent=47 // pred_check_branch
        %3030 = sbr.rel (%p3028) target = $region52
      $region51: #{tpu_custom_call.1} parent=47 // pred_region
        %s3031 = smul.u32 64, %s17
        %p3032 = scmp.lt.s32.totalorder %s3031, 127
        %s3033 = scalar_select %p3032, %s3031, 127
        %s3034 = smul.addr %s3033, 8
        %s3035 = scalar_lea.vmem %s5, %s3034
      $region52: #{tpu_custom_call.1} parent=47 // pred_fallthru
        _
    $region48: #{tpu_custom_call.1} parent=5 // pred_fallthru
      _
  $region6: #{tpu_custom_call.1} parent=0 // loop_footer
    %s15 = sadd.s32 1, %s11
  $region7: #{tpu_custom_call.1} parent=0 // loop_footer_branch
    %10 = sbr.rel target = $region3
  $region8: #{tpu_custom_call.1} parent=0 // loop_exit
    _

</llo_original>
